<compile_context>
chip_gen: v7x
topology: tpu7x:2x2x1
jax: 0.10.0
libtpu: 0.0.40
codegen_flags: <defaults>
</compile_context>

<pallas_src>
import jax
import jax.numpy as jnp
from jax.experimental import pallas as pl
from jax.experimental.pallas import tpu as pltpu


def _conv1x1_kernel(w_ref, x_ref, o_ref):
    # w_ref: (C_out, C_in)   x_ref: (C_in, M)   o_ref: (C_out, M)
    o_ref[...] = jnp.dot(
        w_ref[...], x_ref[...], preferred_element_type=jnp.float32
    ).astype(o_ref.dtype)


def _conv1x1_batched_kernel(w_ref, x_ref, o_ref):
    # w_ref: (C_out, C_in)   x_ref: (1, C_in, M)   o_ref: (1, C_out, M)
    o_ref[0] = jnp.dot(
        w_ref[...], x_ref[0], preferred_element_type=jnp.float32
    ).astype(o_ref.dtype)


def conv2d_1x1(x_nchw: jax.Array, weight_oihw: jax.Array,
               use_bf16: bool = False) -> jax.Array:
    """1x1 conv, stride 1, no bias.  x: (N, C_in, H, W), weight: (C_out, C_in, 1, 1)."""
    n, c_in, h, w = x_nchw.shape
    c_out = weight_oihw.shape[0]
    hw = h * w
    out_dtype = x_nchw.dtype

    # Free reshapes only -- no transposes, NCHW consumed natively.
    w_2d = weight_oihw.reshape(c_out, c_in)

    if use_bf16:
        # Halves HBM traffic for the (largest) weight tensor; accumulation in
        # the kernel stays f32 via preferred_element_type.
        w_2d = w_2d.astype(jnp.bfloat16)
        x_nchw = x_nchw.astype(jnp.bfloat16)

    itemsize = jnp.dtype(x_nchw.dtype).itemsize
    cost = pl.CostEstimate(
        flops=2 * n * c_out * c_in * hw,
        transcendentals=0,
        bytes_accessed=(c_out * c_in + n * c_in * hw) * itemsize
                       + n * c_out * hw * jnp.dtype(out_dtype).itemsize,
    )

    if n == 1:
        # Single-shot: no grid, whole operands resident in VMEM (~1.2 MB).
        x_2d = x_nchw.reshape(c_in, hw)
        out_2d = pl.pallas_call(
            _conv1x1_kernel,
            out_shape=jax.ShapeDtypeStruct((c_out, hw), out_dtype),
            cost_estimate=cost,
        )(w_2d, x_2d)
        return out_2d.reshape(1, c_out, h, w)

    # General batch: grid over N (independent -> "parallel" for megacore).
    x_3d = x_nchw.reshape(n, c_in, hw)
    out_3d = pl.pallas_call(
        _conv1x1_batched_kernel,
        out_shape=jax.ShapeDtypeStruct((n, c_out, hw), out_dtype),
        grid=(n,),
        in_specs=[
            pl.BlockSpec((c_out, c_in), lambda b: (0, 0)),
            pl.BlockSpec((1, c_in, hw), lambda b: (b, 0, 0)),
        ],
        out_specs=pl.BlockSpec((1, c_out, hw), lambda b: (b, 0, 0)),
        compiler_params=pltpu.CompilerParams(
            dimension_semantics=("parallel",)
        ),
        cost_estimate=cost,
    )(w_2d, x_3d)
    return out_3d.reshape(n, c_out, h, w)


if __name__ == "__main__":
    # Shapes implied by the module: x645 is (1, 1632, 7, 7); weight is (128, 1632, 1, 1).
    N, C_IN, H, W = 1, 1632, 7, 7
    C_OUT = 128

    key = jax.random.PRNGKey(0)
    kx, kw = jax.random.split(key)

    x = jax.random.normal(kx, (N, C_IN, H, W), dtype=jnp.float32)
    # Deterministic Kaiming-uniform-like init (matches PyTorch Conv2d default scale).
    fan_in = C_IN * 1 * 1
    bound = (1.0 / fan_in) ** 0.5
    weight = jax.random.uniform(
        kw, (C_OUT, C_IN, 1, 1), dtype=jnp.float32, minval=-bound, maxval=bound
    )

    out = conv2d_1x1(x, weight)
    out = jax.block_until_ready(out)

    # Sanity check against a plain-JAX reference of the same 1x1 conv.
    ref = jnp.einsum("nchw,oc->nohw", x, weight.reshape(C_OUT, C_IN))
    assert out.shape == (N, C_OUT, H, W), out.shape
    assert jnp.allclose(out, ref, atol=2e-4, rtol=2e-4)

    print("KERNEL_OK")
</pallas_src>

<mosaic_0001>
module attributes {stable_mosaic.version = 11 : i64} {
  func.func @_conv1x1_kernel(%arg0: memref<128x1632xf32, #tpu.memory_space<vmem>>, %arg1: memref<1632x49xf32, #tpu.memory_space<vmem>>, %arg2: memref<128x49xf32, #tpu.memory_space<vmem>>) attributes {dimension_semantics = [], scalar_prefetch = 0 : i64, scratch_operands = 0 : i64, tpu.core_type = #tpu.core_type<tc>} {
    %c0 = arith.constant 0 : index
    %c0_0 = arith.constant 0 : index
    %0 = vector.load %arg0[%c0, %c0_0] : memref<128x1632xf32, #tpu.memory_space<vmem>>, vector<128x1632xf32>
    %c0_1 = arith.constant 0 : index
    %c0_2 = arith.constant 0 : index
    %1 = vector.load %arg1[%c0_1, %c0_2] : memref<1632x49xf32, #tpu.memory_space<vmem>>, vector<1632x49xf32>
    %cst = arith.constant dense<0.000000e+00> : vector<128x49xf32>
    %2 = tpu.matmul %0, %1, %cst {dimension_numbers = #tpu.dot_dimension_numbers<[1], [0], [0], [1], [0, 0, 1, 1], [], []>} : vector<128x1632xf32>, vector<1632x49xf32>, vector<128x49xf32> -> vector<128x49xf32>
    %c0_3 = arith.constant 0 : index
    %c0_4 = arith.constant 0 : index
    %3 = vector.load %arg2[%c0_3, %c0_4] : memref<128x49xf32, #tpu.memory_space<vmem>>, vector<128x49xf32>
    tpu.vector_store %arg2[%c0_3, %c0_4], %2 {strides = array<i32>} : memref<128x49xf32, #tpu.memory_space<vmem>>, vector<128x49xf32>,
    return
  }
}

</mosaic_0001>

<llo_original>
// kernel: tpu_custom_call.1
$region0: #{tpu_custom_call.1}
  #allocation0 [shape = 'u32[]', space=smem, size = 0x4, offset = 0x4, fixed_abs, tag = 'smem constant byte address 0x4 - core index']
  #allocation1 [shape = 'u32[144,128]{1,0:T(1,128)}', space=vmem, size = 0x12000, scoped, tag = 'internal scratch']
  %s0 = inlined_call_operand.vmem [shape: f32[128,1632], index: 0, kind: input, shape index: {}]
  %s1 = inlined_call_operand.vmem [shape: f32[1632,49], index: 1, kind: input, shape index: {}]
  %s2 = inlined_call_operand.vmem [shape: f32[128,49], index: 2, kind: output, shape index: {}]
  %s3 = sld [smem:[#allocation0]]
  $region18: #{tpu_custom_call.1} parent=0
    _
  %s5 = ssub.s32 1, %s3
  %s6 = scalar_select 0, %s5, %s3
  // Predicated region
  $region2: #{tpu_custom_call.1} parent=0 // pred_check
    _
  $region3: #{tpu_custom_call.1} parent=0 // pred_check_branch
    %8 = sbr.rel (0) target = $region5
  $region4: #{tpu_custom_call.1} parent=0 // pred_region
    _
  $region5: #{tpu_custom_call.1} parent=0 // pred_fallthru
    _
  // Predicated region
  $region6: #{tpu_custom_call.1} parent=0 // pred_check
    _
  $region7: #{tpu_custom_call.1} parent=0 // pred_check_branch
    %10 = sbr.rel (0) target = $region9
  $region8: #{tpu_custom_call.1} parent=0 // pred_region
    _
  $region9: #{tpu_custom_call.1} parent=0 // pred_fallthru
    _
  %v11 = vld [vmem:[%s0] sm:$0xff]
  %v12 = vld [vmem:[%s0 + $0x8] sm:$0xff]
  %v13 = vld [vmem:[%s0 + $0x10] sm:$0xff]
  %v14 = vld [vmem:[%s0 + $0x18] sm:$0xff]
  %v15 = vld [vmem:[%s0 + $0x20] sm:$0xff]
  %v16 = vld [vmem:[%s0 + $0x28] sm:$0xff]
  %v17 = vld [vmem:[%s0 + $0x30] sm:$0xff]
  %v18 = vld [vmem:[%s0 + $0x38] sm:$0xff]
  %v19 = vld [vmem:[%s0 + $0x40] sm:$0xff]
  %v20 = vld [vmem:[%s0 + $0x48] sm:$0xff]
  %v21 = vld [vmem:[%s0 + $0x50] sm:$0xff]
  %v22 = vld [vmem:[%s0 + $0x58] sm:$0xff]
  %v23 = vld [vmem:[%s0 + $0x60] sm:$0xff]
  %v24 = vld [vmem:[%s0 + $0x68] sm:$0xff]
  %v25 = vld [vmem:[%s0 + $0x70] sm:$0xff]
  %v26 = vld [vmem:[%s0 + $0x78] sm:$0xff]
  %v27 = vld [vmem:[%s0 + $0x80] sm:$0xff]
  %v28 = vld [vmem:[%s0 + $0x88] sm:$0xff]
  %v29 = vld [vmem:[%s0 + $0x90] sm:$0xff]
  %v30 = vld [vmem:[%s0 + $0x98] sm:$0xff]
  %v31 = vld [vmem:[%s0 + $0xa0] sm:$0xff]
  %v32 = vld [vmem:[%s0 + $0xa8] sm:$0xff]
  %v33 = vld [vmem:[%s0 + $0xb0] sm:$0xff]
  %v34 = vld [vmem:[%s0 + $0xb8] sm:$0xff]
  %v35 = vld [vmem:[%s0 + $0xc0] sm:$0xff]
  %v36 = vld [vmem:[%s0 + $0xc8] sm:$0xff]
  %v37 = vld [vmem:[%s0 + $0xd0] sm:$0xff]
  %v38 = vld [vmem:[%s0 + $0xd8] sm:$0xff]
  %v39 = vld [vmem:[%s0 + $0xe0] sm:$0xff]
  %v40 = vld [vmem:[%s0 + $0xe8] sm:$0xff]
  %v41 = vld [vmem:[%s0 + $0xf0] sm:$0xff]
  %v42 = vld [vmem:[%s0 + $0xf8] sm:$0xff]
  %v43 = vld [vmem:[%s0 + $0x100] sm:$0xff]
  %v44 = vld [vmem:[%s0 + $0x108] sm:$0xff]
  %v45 = vld [vmem:[%s0 + $0x110] sm:$0xff]
  %v46 = vld [vmem:[%s0 + $0x118] sm:$0xff]
  %v47 = vld [vmem:[%s0 + $0x120] sm:$0xff]
  %v48 = vld [vmem:[%s0 + $0x128] sm:$0xff]
  %v49 = vld [vmem:[%s0 + $0x130] sm:$0xff]
  %v50 = vld [vmem:[%s0 + $0x138] sm:$0xff]
  %v51 = vld [vmem:[%s0 + $0x140] sm:$0xff]
  %v52 = vld [vmem:[%s0 + $0x148] sm:$0xff]
  %v53 = vld [vmem:[%s0 + $0x150] sm:$0xff]
  %v54 = vld [vmem:[%s0 + $0x158] sm:$0xff]
  %v55 = vld [vmem:[%s0 + $0x160] sm:$0xff]
  %v56 = vld [vmem:[%s0 + $0x168] sm:$0xff]
  %v57 = vld [vmem:[%s0 + $0x170] sm:$0xff]
  %v58 = vld [vmem:[%s0 + $0x178] sm:$0xff]
  %v59 = vld [vmem:[%s0 + $0x180] sm:$0xff]
  %v60 = vld [vmem:[%s0 + $0x188] sm:$0xff]
  %v61 = vld [vmem:[%s0 + $0x190] sm:$0xff]
  %v62 = vld [vmem:[%s0 + $0x198] sm:$0xff]
  %v63 = vld [vmem:[%s0 + $0x1a0] sm:$0xff]
  %v64 = vld [vmem:[%s0 + $0x1a8] sm:$0xff]
  %v65 = vld [vmem:[%s0 + $0x1b0] sm:$0xff]
  %v66 = vld [vmem:[%s0 + $0x1b8] sm:$0xff]
  %v67 = vld [vmem:[%s0 + $0x1c0] sm:$0xff]
  %v68 = vld [vmem:[%s0 + $0x1c8] sm:$0xff]
  %v69 = vld [vmem:[%s0 + $0x1d0] sm:$0xff]
  %v70 = vld [vmem:[%s0 + $0x1d8] sm:$0xff]
  %v71 = vld [vmem:[%s0 + $0x1e0] sm:$0xff]
  %v72 = vld [vmem:[%s0 + $0x1e8] sm:$0xff]
  %v73 = vld [vmem:[%s0 + $0x1f0] sm:$0xff]
  %v74 = vld [vmem:[%s0 + $0x1f8] sm:$0xff]
  %v75 = vld [vmem:[%s0 + $0x200] sm:$0xff]
  %v76 = vld [vmem:[%s0 + $0x208] sm:$0xff]
  %v77 = vld [vmem:[%s0 + $0x210] sm:$0xff]
  %v78 = vld [vmem:[%s0 + $0x218] sm:$0xff]
  %v79 = vld [vmem:[%s0 + $0x220] sm:$0xff]
  %v80 = vld [vmem:[%s0 + $0x228] sm:$0xff]
  %v81 = vld [vmem:[%s0 + $0x230] sm:$0xff]
  %v82 = vld [vmem:[%s0 + $0x238] sm:$0xff]
  %v83 = vld [vmem:[%s0 + $0x240] sm:$0xff]
  %v84 = vld [vmem:[%s0 + $0x248] sm:$0xff]
  %v85 = vld [vmem:[%s0 + $0x250] sm:$0xff]
  %v86 = vld [vmem:[%s0 + $0x258] sm:$0xff]
  %v87 = vld [vmem:[%s0 + $0x260] sm:$0xff]
  %v88 = vld [vmem:[%s0 + $0x268] sm:$0xff]
  %v89 = vld [vmem:[%s0 + $0x270] sm:$0xff]
  %v90 = vld [vmem:[%s0 + $0x278] sm:$0xff]
  %v91 = vld [vmem:[%s0 + $0x280] sm:$0xff]
  %v92 = vld [vmem:[%s0 + $0x288] sm:$0xff]
  %v93 = vld [vmem:[%s0 + $0x290] sm:$0xff]
  %v94 = vld [vmem:[%s0 + $0x298] sm:$0xff]
  %v95 = vld [vmem:[%s0 + $0x2a0] sm:$0xff]
  %v96 = vld [vmem:[%s0 + $0x2a8] sm:$0xff]
  %v97 = vld [vmem:[%s0 + $0x2b0] sm:$0xff]
  %v98 = vld [vmem:[%s0 + $0x2b8] sm:$0xff]
  %v99 = vld [vmem:[%s0 + $0x2c0] sm:$0xff]
  %v100 = vld [vmem:[%s0 + $0x2c8] sm:$0xff]
  %v101 = vld [vmem:[%s0 + $0x2d0] sm:$0xff]
  %v102 = vld [vmem:[%s0 + $0x2d8] sm:$0xff]
  %v103 = vld [vmem:[%s0 + $0x2e0] sm:$0xff]
  %v104 = vld [vmem:[%s0 + $0x2e8] sm:$0xff]
  %v105 = vld [vmem:[%s0 + $0x2f0] sm:$0xff]
  %v106 = vld [vmem:[%s0 + $0x2f8] sm:$0xff]
  %v107 = vld [vmem:[%s0 + $0x300] sm:$0xff]
  %v108 = vld [vmem:[%s0 + $0x308] sm:$0xff]
  %v109 = vld [vmem:[%s0 + $0x310] sm:$0xff]
  %v110 = vld [vmem:[%s0 + $0x318] sm:$0xff]
  %v111 = vld [vmem:[%s0 + $0x320] sm:$0xff]
  %v112 = vld [vmem:[%s0 + $0x328] sm:$0xff]
  %v113 = vld [vmem:[%s0 + $0x330] sm:$0xff]
  %v114 = vld [vmem:[%s0 + $0x338] sm:$0xff]
  %v115 = vld [vmem:[%s0 + $0x340] sm:$0xff]
  %v116 = vld [vmem:[%s0 + $0x348] sm:$0xff]
  %v117 = vld [vmem:[%s0 + $0x350] sm:$0xff]
  %v118 = vld [vmem:[%s0 + $0x358] sm:$0xff]
  %v119 = vld [vmem:[%s0 + $0x360] sm:$0xff]
  %v120 = vld [vmem:[%s0 + $0x368] sm:$0xff]
  %v121 = vld [vmem:[%s0 + $0x370] sm:$0xff]
  %v122 = vld [vmem:[%s0 + $0x378] sm:$0xff]
  %v123 = vld [vmem:[%s0 + $0x380] sm:$0xff]
  %v124 = vld [vmem:[%s0 + $0x388] sm:$0xff]
  %v125 = vld [vmem:[%s0 + $0x390] sm:$0xff]
  %v126 = vld [vmem:[%s0 + $0x398] sm:$0xff]
  %v127 = vld [vmem:[%s0 + $0x3a0] sm:$0xff]
  %v128 = vld [vmem:[%s0 + $0x3a8] sm:$0xff]
  %v129 = vld [vmem:[%s0 + $0x3b0] sm:$0xff]
  %v130 = vld [vmem:[%s0 + $0x3b8] sm:$0xff]
  %v131 = vld [vmem:[%s0 + $0x3c0] sm:$0xff]
  %v132 = vld [vmem:[%s0 + $0x3c8] sm:$0xff]
  %v133 = vld [vmem:[%s0 + $0x3d0] sm:$0xff]
  %v134 = vld [vmem:[%s0 + $0x3d8] sm:$0xff]
  %v135 = vld [vmem:[%s0 + $0x3e0] sm:$0xff]
  %v136 = vld [vmem:[%s0 + $0x3e8] sm:$0xff]
  %v137 = vld [vmem:[%s0 + $0x3f0] sm:$0xff]
  %v138 = vld [vmem:[%s0 + $0x3f8] sm:$0xff]
  %v139 = vld [vmem:[%s0 + $0x400] sm:$0xff]
  %v140 = vld [vmem:[%s0 + $0x408] sm:$0xff]
  %v141 = vld [vmem:[%s0 + $0x410] sm:$0xff]
  %v142 = vld [vmem:[%s0 + $0x418] sm:$0xff]
  %v143 = vld [vmem:[%s0 + $0x420] sm:$0xff]
  %v144 = vld [vmem:[%s0 + $0x428] sm:$0xff]
  %v145 = vld [vmem:[%s0 + $0x430] sm:$0xff]
  %v146 = vld [vmem:[%s0 + $0x438] sm:$0xff]
  %v147 = vld [vmem:[%s0 + $0x440] sm:$0xff]
  %v148 = vld [vmem:[%s0 + $0x448] sm:$0xff]
  %v149 = vld [vmem:[%s0 + $0x450] sm:$0xff]
  %v150 = vld [vmem:[%s0 + $0x458] sm:$0xff]
  %v151 = vld [vmem:[%s0 + $0x460] sm:$0xff]
  %v152 = vld [vmem:[%s0 + $0x468] sm:$0xff]
  %v153 = vld [vmem:[%s0 + $0x470] sm:$0xff]
  %v154 = vld [vmem:[%s0 + $0x478] sm:$0xff]
  %v155 = vld [vmem:[%s0 + $0x480] sm:$0xff]
  %v156 = vld [vmem:[%s0 + $0x488] sm:$0xff]
  %v157 = vld [vmem:[%s0 + $0x490] sm:$0xff]
  %v158 = vld [vmem:[%s0 + $0x498] sm:$0xff]
  %v159 = vld [vmem:[%s0 + $0x4a0] sm:$0xff]
  %v160 = vld [vmem:[%s0 + $0x4a8] sm:$0xff]
  %v161 = vld [vmem:[%s0 + $0x4b0] sm:$0xff]
  %v162 = vld [vmem:[%s0 + $0x4b8] sm:$0xff]
  %v163 = vld [vmem:[%s0 + $0x4c0] sm:$0xff]
  %v164 = vld [vmem:[%s0 + $0x4c8] sm:$0xff]
  %v165 = vld [vmem:[%s0 + $0x4d0] sm:$0xff]
  %v166 = vld [vmem:[%s0 + $0x4d8] sm:$0xff]
  %v167 = vld [vmem:[%s0 + $0x4e0] sm:$0xff]
  %v168 = vld [vmem:[%s0 + $0x4e8] sm:$0xff]
  %v169 = vld [vmem:[%s0 + $0x4f0] sm:$0xff]
  %v170 = vld [vmem:[%s0 + $0x4f8] sm:$0xff]
  %v171 = vld [vmem:[%s0 + $0x500] sm:$0xff]
  %v172 = vld [vmem:[%s0 + $0x508] sm:$0xff]
  %v173 = vld [vmem:[%s0 + $0x510] sm:$0xff]
  %v174 = vld [vmem:[%s0 + $0x518] sm:$0xff]
  %v175 = vld [vmem:[%s0 + $0x520] sm:$0xff]
  %v176 = vld [vmem:[%s0 + $0x528] sm:$0xff]
  %v177 = vld [vmem:[%s0 + $0x530] sm:$0xff]
  %v178 = vld [vmem:[%s0 + $0x538] sm:$0xff]
  %v179 = vld [vmem:[%s0 + $0x540] sm:$0xff]
  %v180 = vld [vmem:[%s0 + $0x548] sm:$0xff]
  %v181 = vld [vmem:[%s0 + $0x550] sm:$0xff]
  %v182 = vld [vmem:[%s0 + $0x558] sm:$0xff]
  %v183 = vld [vmem:[%s0 + $0x560] sm:$0xff]
  %v184 = vld [vmem:[%s0 + $0x568] sm:$0xff]
  %v185 = vld [vmem:[%s0 + $0x570] sm:$0xff]
  %v186 = vld [vmem:[%s0 + $0x578] sm:$0xff]
  %v187 = vld [vmem:[%s0 + $0x580] sm:$0xff]
  %v188 = vld [vmem:[%s0 + $0x588] sm:$0xff]
  %v189 = vld [vmem:[%s0 + $0x590] sm:$0xff]
  %v190 = vld [vmem:[%s0 + $0x598] sm:$0xff]
  %v191 = vld [vmem:[%s0 + $0x5a0] sm:$0xff]
  %v192 = vld [vmem:[%s0 + $0x5a8] sm:$0xff]
  %v193 = vld [vmem:[%s0 + $0x5b0] sm:$0xff]
  %v194 = vld [vmem:[%s0 + $0x5b8] sm:$0xff]
  %v195 = vld [vmem:[%s0 + $0x5c0] sm:$0xff]
  %v196 = vld [vmem:[%s0 + $0x5c8] sm:$0xff]
  %v197 = vld [vmem:[%s0 + $0x5d0] sm:$0xff]
  %v198 = vld [vmem:[%s0 + $0x5d8] sm:$0xff]
  %v199 = vld [vmem:[%s0 + $0x5e0] sm:$0xff]
  %v200 = vld [vmem:[%s0 + $0x5e8] sm:$0xff]
  %v201 = vld [vmem:[%s0 + $0x5f0] sm:$0xff]
  %v202 = vld [vmem:[%s0 + $0x5f8] sm:$0xff]
  %v203 = vld [vmem:[%s0 + $0x600] sm:$0xff]
  %v204 = vld [vmem:[%s0 + $0x608] sm:$0xff]
  %v205 = vld [vmem:[%s0 + $0x610] sm:$0xff]
  %v206 = vld [vmem:[%s0 + $0x618] sm:$0xff]
  %v207 = vld [vmem:[%s0 + $0x620] sm:$0xff]
  %v208 = vld [vmem:[%s0 + $0x628] sm:$0xff]
  %v209 = vld [vmem:[%s0 + $0x630] sm:$0xff]
  %v210 = vld [vmem:[%s0 + $0x638] sm:$0xff]
  %v211 = vld [vmem:[%s0 + $0x640] sm:$0xff]
  %v212 = vld [vmem:[%s0 + $0x648] sm:$0xff]
  %v213 = vld [vmem:[%s0 + $0x650] sm:$0xff]
  %v214 = vld [vmem:[%s0 + $0x658] sm:$0xff]
  %v215 = vld [vmem:[%s0 + $0x660] sm:$0xff]
  %v216 = vld [vmem:[%s0 + $0x668] sm:$0xff]
  %v217 = vld [vmem:[%s0 + $0x670] sm:$0xff]
  %v218 = vld [vmem:[%s0 + $0x678] sm:$0xff]
  %v219 = vld [vmem:[%s1] sm:$0xff]
  %v220 = vld [vmem:[%s1 + $0x8] sm:$0xff]
  %v221 = vld [vmem:[%s1 + $0x10] sm:$0xff]
  %v222 = vld [vmem:[%s1 + $0x18] sm:$0xff]
  %v223 = vld [vmem:[%s1 + $0x20] sm:$0xff]
  %v224 = vld [vmem:[%s1 + $0x28] sm:$0xff]
  %v225 = vld [vmem:[%s1 + $0x30] sm:$0xff]
  %v226 = vld [vmem:[%s1 + $0x38] sm:$0xff]
  %v227 = vld [vmem:[%s1 + $0x40] sm:$0xff]
  %v228 = vld [vmem:[%s1 + $0x48] sm:$0xff]
  %v229 = vld [vmem:[%s1 + $0x50] sm:$0xff]
  %v230 = vld [vmem:[%s1 + $0x58] sm:$0xff]
  %v231 = vld [vmem:[%s1 + $0x60] sm:$0xff]
  %v232 = vld [vmem:[%s1 + $0x68] sm:$0xff]
  %v233 = vld [vmem:[%s1 + $0x70] sm:$0xff]
  %v234 = vld [vmem:[%s1 + $0x78] sm:$0xff]
  %v235 = vld [vmem:[%s1 + $0x80] sm:$0xff]
  %v236 = vld [vmem:[%s1 + $0x88] sm:$0xff]
  %v237 = vld [vmem:[%s1 + $0x90] sm:$0xff]
  %v238 = vld [vmem:[%s1 + $0x98] sm:$0xff]
  %v239 = vld [vmem:[%s1 + $0xa0] sm:$0xff]
  %v240 = vld [vmem:[%s1 + $0xa8] sm:$0xff]
  %v241 = vld [vmem:[%s1 + $0xb0] sm:$0xff]
  %v242 = vld [vmem:[%s1 + $0xb8] sm:$0xff]
  %v243 = vld [vmem:[%s1 + $0xc0] sm:$0xff]
  %v244 = vld [vmem:[%s1 + $0xc8] sm:$0xff]
  %v245 = vld [vmem:[%s1 + $0xd0] sm:$0xff]
  %v246 = vld [vmem:[%s1 + $0xd8] sm:$0xff]
  %v247 = vld [vmem:[%s1 + $0xe0] sm:$0xff]
  %v248 = vld [vmem:[%s1 + $0xe8] sm:$0xff]
  %v249 = vld [vmem:[%s1 + $0xf0] sm:$0xff]
  %v250 = vld [vmem:[%s1 + $0xf8] sm:$0xff]
  %v251 = vld [vmem:[%s1 + $0x100] sm:$0xff]
  %v252 = vld [vmem:[%s1 + $0x108] sm:$0xff]
  %v253 = vld [vmem:[%s1 + $0x110] sm:$0xff]
  %v254 = vld [vmem:[%s1 + $0x118] sm:$0xff]
  %v255 = vld [vmem:[%s1 + $0x120] sm:$0xff]
  %v256 = vld [vmem:[%s1 + $0x128] sm:$0xff]
  %v257 = vld [vmem:[%s1 + $0x130] sm:$0xff]
  %v258 = vld [vmem:[%s1 + $0x138] sm:$0xff]
  %v259 = vld [vmem:[%s1 + $0x140] sm:$0xff]
  %v260 = vld [vmem:[%s1 + $0x148] sm:$0xff]
  %v261 = vld [vmem:[%s1 + $0x150] sm:$0xff]
  %v262 = vld [vmem:[%s1 + $0x158] sm:$0xff]
  %v263 = vld [vmem:[%s1 + $0x160] sm:$0xff]
  %v264 = vld [vmem:[%s1 + $0x168] sm:$0xff]
  %v265 = vld [vmem:[%s1 + $0x170] sm:$0xff]
  %v266 = vld [vmem:[%s1 + $0x178] sm:$0xff]
  %v267 = vld [vmem:[%s1 + $0x180] sm:$0xff]
  %v268 = vld [vmem:[%s1 + $0x188] sm:$0xff]
  %v269 = vld [vmem:[%s1 + $0x190] sm:$0xff]
  %v270 = vld [vmem:[%s1 + $0x198] sm:$0xff]
  %v271 = vld [vmem:[%s1 + $0x1a0] sm:$0xff]
  %v272 = vld [vmem:[%s1 + $0x1a8] sm:$0xff]
  %v273 = vld [vmem:[%s1 + $0x1b0] sm:$0xff]
  %v274 = vld [vmem:[%s1 + $0x1b8] sm:$0xff]
  %v275 = vld [vmem:[%s1 + $0x1c0] sm:$0xff]
  %v276 = vld [vmem:[%s1 + $0x1c8] sm:$0xff]
  %v277 = vld [vmem:[%s1 + $0x1d0] sm:$0xff]
  %v278 = vld [vmem:[%s1 + $0x1d8] sm:$0xff]
  %v279 = vld [vmem:[%s1 + $0x1e0] sm:$0xff]
  %v280 = vld [vmem:[%s1 + $0x1e8] sm:$0xff]
  %v281 = vld [vmem:[%s1 + $0x1f0] sm:$0xff]
  %v282 = vld [vmem:[%s1 + $0x1f8] sm:$0xff]
  %v283 = vld [vmem:[%s1 + $0x200] sm:$0xff]
  %v284 = vld [vmem:[%s1 + $0x208] sm:$0xff]
  %v285 = vld [vmem:[%s1 + $0x210] sm:$0xff]
  %v286 = vld [vmem:[%s1 + $0x218] sm:$0xff]
  %v287 = vld [vmem:[%s1 + $0x220] sm:$0xff]
  %v288 = vld [vmem:[%s1 + $0x228] sm:$0xff]
  %v289 = vld [vmem:[%s1 + $0x230] sm:$0xff]
  %v290 = vld [vmem:[%s1 + $0x238] sm:$0xff]
  %v291 = vld [vmem:[%s1 + $0x240] sm:$0xff]
  %v292 = vld [vmem:[%s1 + $0x248] sm:$0xff]
  %v293 = vld [vmem:[%s1 + $0x250] sm:$0xff]
  %v294 = vld [vmem:[%s1 + $0x258] sm:$0xff]
  %v295 = vld [vmem:[%s1 + $0x260] sm:$0xff]
  %v296 = vld [vmem:[%s1 + $0x268] sm:$0xff]
  %v297 = vld [vmem:[%s1 + $0x270] sm:$0xff]
  %v298 = vld [vmem:[%s1 + $0x278] sm:$0xff]
  %v299 = vld [vmem:[%s1 + $0x280] sm:$0xff]
  %v300 = vld [vmem:[%s1 + $0x288] sm:$0xff]
  %v301 = vld [vmem:[%s1 + $0x290] sm:$0xff]
  %v302 = vld [vmem:[%s1 + $0x298] sm:$0xff]
  %v303 = vld [vmem:[%s1 + $0x2a0] sm:$0xff]
  %v304 = vld [vmem:[%s1 + $0x2a8] sm:$0xff]
  %v305 = vld [vmem:[%s1 + $0x2b0] sm:$0xff]
  %v306 = vld [vmem:[%s1 + $0x2b8] sm:$0xff]
  %v307 = vld [vmem:[%s1 + $0x2c0] sm:$0xff]
  %v308 = vld [vmem:[%s1 + $0x2c8] sm:$0xff]
  %v309 = vld [vmem:[%s1 + $0x2d0] sm:$0xff]
  %v310 = vld [vmem:[%s1 + $0x2d8] sm:$0xff]
  %v311 = vld [vmem:[%s1 + $0x2e0] sm:$0xff]
  %v312 = vld [vmem:[%s1 + $0x2e8] sm:$0xff]
  %v313 = vld [vmem:[%s1 + $0x2f0] sm:$0xff]
  %v314 = vld [vmem:[%s1 + $0x2f8] sm:$0xff]
  %v315 = vld [vmem:[%s1 + $0x300] sm:$0xff]
  %v316 = vld [vmem:[%s1 + $0x308] sm:$0xff]
  %v317 = vld [vmem:[%s1 + $0x310] sm:$0xff]
  %v318 = vld [vmem:[%s1 + $0x318] sm:$0xff]
  %v319 = vld [vmem:[%s1 + $0x320] sm:$0xff]
  %v320 = vld [vmem:[%s1 + $0x328] sm:$0xff]
  %v321 = vld [vmem:[%s1 + $0x330] sm:$0xff]
  %v322 = vld [vmem:[%s1 + $0x338] sm:$0xff]
  %v323 = vld [vmem:[%s1 + $0x340] sm:$0xff]
  %v324 = vld [vmem:[%s1 + $0x348] sm:$0xff]
  %v325 = vld [vmem:[%s1 + $0x350] sm:$0xff]
  %v326 = vld [vmem:[%s1 + $0x358] sm:$0xff]
  %v327 = vld [vmem:[%s1 + $0x360] sm:$0xff]
  %v328 = vld [vmem:[%s1 + $0x368] sm:$0xff]
  %v329 = vld [vmem:[%s1 + $0x370] sm:$0xff]
  %v330 = vld [vmem:[%s1 + $0x378] sm:$0xff]
  %v331 = vld [vmem:[%s1 + $0x380] sm:$0xff]
  %v332 = vld [vmem:[%s1 + $0x388] sm:$0xff]
  %v333 = vld [vmem:[%s1 + $0x390] sm:$0xff]
  %v334 = vld [vmem:[%s1 + $0x398] sm:$0xff]
  %v335 = vld [vmem:[%s1 + $0x3a0] sm:$0xff]
  %v336 = vld [vmem:[%s1 + $0x3a8] sm:$0xff]
  %v337 = vld [vmem:[%s1 + $0x3b0] sm:$0xff]
  %v338 = vld [vmem:[%s1 + $0x3b8] sm:$0xff]
  %v339 = vld [vmem:[%s1 + $0x3c0] sm:$0xff]
  %v340 = vld [vmem:[%s1 + $0x3c8] sm:$0xff]
  %v341 = vld [vmem:[%s1 + $0x3d0] sm:$0xff]
  %v342 = vld [vmem:[%s1 + $0x3d8] sm:$0xff]
  %v343 = vld [vmem:[%s1 + $0x3e0] sm:$0xff]
  %v344 = vld [vmem:[%s1 + $0x3e8] sm:$0xff]
  %v345 = vld [vmem:[%s1 + $0x3f0] sm:$0xff]
  %v346 = vld [vmem:[%s1 + $0x3f8] sm:$0xff]
  %v347 = vld [vmem:[%s1 + $0x400] sm:$0xff]
  %v348 = vld [vmem:[%s1 + $0x408] sm:$0xff]
  %v349 = vld [vmem:[%s1 + $0x410] sm:$0xff]
  %v350 = vld [vmem:[%s1 + $0x418] sm:$0xff]
  %v351 = vld [vmem:[%s1 + $0x420] sm:$0xff]
  %v352 = vld [vmem:[%s1 + $0x428] sm:$0xff]
  %v353 = vld [vmem:[%s1 + $0x430] sm:$0xff]
  %v354 = vld [vmem:[%s1 + $0x438] sm:$0xff]
  %v355 = vld [vmem:[%s1 + $0x440] sm:$0xff]
  %v356 = vld [vmem:[%s1 + $0x448] sm:$0xff]
  %v357 = vld [vmem:[%s1 + $0x450] sm:$0xff]
  %v358 = vld [vmem:[%s1 + $0x458] sm:$0xff]
  %v359 = vld [vmem:[%s1 + $0x460] sm:$0xff]
  %v360 = vld [vmem:[%s1 + $0x468] sm:$0xff]
  %v361 = vld [vmem:[%s1 + $0x470] sm:$0xff]
  %v362 = vld [vmem:[%s1 + $0x478] sm:$0xff]
  %v363 = vld [vmem:[%s1 + $0x480] sm:$0xff]
  %v364 = vld [vmem:[%s1 + $0x488] sm:$0xff]
  %v365 = vld [vmem:[%s1 + $0x490] sm:$0xff]
  %v366 = vld [vmem:[%s1 + $0x498] sm:$0xff]
  %v367 = vld [vmem:[%s1 + $0x4a0] sm:$0xff]
  %v368 = vld [vmem:[%s1 + $0x4a8] sm:$0xff]
  %v369 = vld [vmem:[%s1 + $0x4b0] sm:$0xff]
  %v370 = vld [vmem:[%s1 + $0x4b8] sm:$0xff]
  %v371 = vld [vmem:[%s1 + $0x4c0] sm:$0xff]
  %v372 = vld [vmem:[%s1 + $0x4c8] sm:$0xff]
  %v373 = vld [vmem:[%s1 + $0x4d0] sm:$0xff]
  %v374 = vld [vmem:[%s1 + $0x4d8] sm:$0xff]
  %v375 = vld [vmem:[%s1 + $0x4e0] sm:$0xff]
  %v376 = vld [vmem:[%s1 + $0x4e8] sm:$0xff]
  %v377 = vld [vmem:[%s1 + $0x4f0] sm:$0xff]
  %v378 = vld [vmem:[%s1 + $0x4f8] sm:$0xff]
  %v379 = vld [vmem:[%s1 + $0x500] sm:$0xff]
  %v380 = vld [vmem:[%s1 + $0x508] sm:$0xff]
  %v381 = vld [vmem:[%s1 + $0x510] sm:$0xff]
  %v382 = vld [vmem:[%s1 + $0x518] sm:$0xff]
  %v383 = vld [vmem:[%s1 + $0x520] sm:$0xff]
  %v384 = vld [vmem:[%s1 + $0x528] sm:$0xff]
  %v385 = vld [vmem:[%s1 + $0x530] sm:$0xff]
  %v386 = vld [vmem:[%s1 + $0x538] sm:$0xff]
  %v387 = vld [vmem:[%s1 + $0x540] sm:$0xff]
  %v388 = vld [vmem:[%s1 + $0x548] sm:$0xff]
  %v389 = vld [vmem:[%s1 + $0x550] sm:$0xff]
  %v390 = vld [vmem:[%s1 + $0x558] sm:$0xff]
  %v391 = vld [vmem:[%s1 + $0x560] sm:$0xff]
  %v392 = vld [vmem:[%s1 + $0x568] sm:$0xff]
  %v393 = vld [vmem:[%s1 + $0x570] sm:$0xff]
  %v394 = vld [vmem:[%s1 + $0x578] sm:$0xff]
  %v395 = vld [vmem:[%s1 + $0x580] sm:$0xff]
  %v396 = vld [vmem:[%s1 + $0x588] sm:$0xff]
  %v397 = vld [vmem:[%s1 + $0x590] sm:$0xff]
  %v398 = vld [vmem:[%s1 + $0x598] sm:$0xff]
  %v399 = vld [vmem:[%s1 + $0x5a0] sm:$0xff]
  %v400 = vld [vmem:[%s1 + $0x5a8] sm:$0xff]
  %v401 = vld [vmem:[%s1 + $0x5b0] sm:$0xff]
  %v402 = vld [vmem:[%s1 + $0x5b8] sm:$0xff]
  %v403 = vld [vmem:[%s1 + $0x5c0] sm:$0xff]
  %v404 = vld [vmem:[%s1 + $0x5c8] sm:$0xff]
  %v405 = vld [vmem:[%s1 + $0x5d0] sm:$0xff]
  %v406 = vld [vmem:[%s1 + $0x5d8] sm:$0xff]
  %v407 = vld [vmem:[%s1 + $0x5e0] sm:$0xff]
  %v408 = vld [vmem:[%s1 + $0x5e8] sm:$0xff]
  %v409 = vld [vmem:[%s1 + $0x5f0] sm:$0xff]
  %v410 = vld [vmem:[%s1 + $0x5f8] sm:$0xff]
  %v411 = vld [vmem:[%s1 + $0x600] sm:$0xff]
  %v412 = vld [vmem:[%s1 + $0x608] sm:$0xff]
  %v413 = vld [vmem:[%s1 + $0x610] sm:$0xff]
  %v414 = vld [vmem:[%s1 + $0x618] sm:$0xff]
  %v415 = vld [vmem:[%s1 + $0x620] sm:$0xff]
  %v416 = vld [vmem:[%s1 + $0x628] sm:$0xff]
  %v417 = vld [vmem:[%s1 + $0x630] sm:$0xff]
  %v418 = vld [vmem:[%s1 + $0x638] sm:$0xff]
  %v419 = vld [vmem:[%s1 + $0x640] sm:$0xff]
  %v420 = vld [vmem:[%s1 + $0x648] sm:$0xff]
  %v421 = vld [vmem:[%s1 + $0x650] sm:$0xff]
  %v422 = vld [vmem:[%s1 + $0x658] sm:$0xff]
  %vm423 = vcmask 785408
  %v425 = vsel %vm423, %v23, 0
  %v428 = vsel %vm423, %v36, 0
  %v431 = vsel %vm423, %v49, 0
  %v434 = vsel %vm423, %v62, 0
  %v437 = vsel %vm423, %v75, 0
  %v440 = vsel %vm423, %v88, 0
  %v443 = vsel %vm423, %v101, 0
  %v446 = vsel %vm423, %v114, 0
  %v449 = vsel %vm423, %v127, 0
  %v452 = vsel %vm423, %v140, 0
  %v455 = vsel %vm423, %v153, 0
  %v458 = vsel %vm423, %v166, 0
  %v461 = vsel %vm423, %v179, 0
  %v464 = vsel %vm423, %v192, 0
  %v467 = vsel %vm423, %v205, 0
  %v470 = vsel %vm423, %v218, 0
  %472 = vmatprep.subr.mxu0 0.0
  %473 = vmatpush1.msra.mxu0 %v219
  %474 = vmatprep.subr.mxu0 0.0
  %475 = vmatpush1.msra.mxu0 %v220
  %476 = vmatprep.subr.mxu0 0.0
  %477 = vmatpush1.msra.mxu0 %v221
  %478 = vmatprep.subr.mxu0 0.0
  %479 = vmatpush1.msra.mxu0 %v222
  %480 = vmatprep.subr.mxu0 0.0
  %481 = vmatpush1.msra.mxu0 %v223
  %482 = vmatprep.subr.mxu0 0.0
  %483 = vmatpush1.msra.mxu0 %v224
  %484 = vmatprep.subr.mxu0 0.0
  %485 = vmatpush1.msra.mxu0 %v225
  %486 = vmatprep.subr.mxu0 0.0
  %487 = vmatpush1.msra.mxu0 %v226
  %488 = vmatprep.subr.mxu0 0.0
  %489 = vmatpush1.msra.mxu0 %v227
  %490 = vmatprep.subr.mxu0 0.0
  %491 = vmatpush1.msra.mxu0 %v228
  %492 = vmatprep.subr.mxu0 0.0
  %493 = vmatpush1.msra.mxu0 %v229
  %494 = vmatprep.subr.mxu0 0.0
  %495 = vmatpush1.msra.mxu0 %v230
  %496 = vmatprep.subr.mxu0 0.0
  %497 = vmatpush1.msra.mxu0 %v231
  %498 = vmatprep.subr.mxu0 0.0
  %499 = vmatpush1.msra.mxu0 %v232
  %500 = vmatprep.subr.mxu0 0.0
  %501 = vmatpush1.msra.mxu0 %v233
  %502 = vmatprep.subr.mxu0 0.0
  %503 = vmatpush1.msra.mxu0 %v234
  %504 = vmatprep.subr.mxu0 0.0
  %505 = vmatpush1.msra.mxu0 %v235
  %506 = vmatprep.subr.mxu0 0.0
  %507 = vmatpush1.msra.mxu0 %v236
  %508 = vmatprep.subr.mxu0 0.0
  %509 = vmatpush1.msra.mxu0 %v237
  %510 = vmatprep.subr.mxu0 0.0
  %511 = vmatpush1.msra.mxu0 %v238
  %512 = vmatprep.subr.mxu0 0.0
  %513 = vmatpush1.msra.mxu0 %v239
  %514 = vmatprep.subr.mxu0 0.0
  %515 = vmatpush1.msra.mxu0 %v240
  %516 = vmatprep.subr.mxu0 0.0
  %517 = vmatpush1.msra.mxu0 %v241
  %518 = vmatprep.subr.mxu0 0.0
  %519 = vmatpush1.msra.mxu0 %v242
  %520 = vmatprep.subr.mxu0 0.0
  %521 = vmatpush1.msra.mxu0 %v243
  %522 = vmatprep.subr.mxu0 0.0
  %523 = vmatpush1.msra.mxu0 %v244
  %524 = vmatprep.subr.mxu0 0.0
  %525 = vmatpush1.msra.mxu0 %v245
  %526 = vmatprep.subr.mxu0 0.0
  %527 = vmatpush1.msra.mxu0 %v246
  %528 = vmatprep.subr.mxu0 0.0
  %529 = vmatpush1.msra.mxu0 %v247
  %530 = vmatprep.subr.mxu0 0.0
  %531 = vmatpush1.msra.mxu0 %v248
  %532 = vmatprep.subr.mxu0 0.0
  %533 = vmatpush1.msra.mxu0 %v249
  %534 = vmatprep.subr.mxu0 0.0
  %535 = vmatpush1.msra.mxu0 %v250
  %536 = vmatprep.mubr.f32.mxu0 %v12
  %537 = vmatmul.mubr.f32.gmra.mrb[0].mxu0 %v11
  %v538 = vpop.f32.mrb[0].mxu0
  %v539 = vadd.f32 0.0, %v538
  %v540 = vpop.f32.mrb[0].mxu0
  %541 = vmatprep.mubr.f32.mxu0 %v25
  %542 = vmatmul.mubr.f32.gmra.mrb[0].mxu0 %v24
  %v543 = vpop.f32.mrb[0].mxu0
  %v544 = vadd.f32 0.0, %v543
  %v545 = vpop.f32.mrb[0].mxu0
  %546 = vmatprep.mubr.f32.mxu0 %v38
  %547 = vmatmul.mubr.f32.gmra.mrb[0].mxu0 %v37
  %v548 = vpop.f32.mrb[0].mxu0
  %v549 = vadd.f32 0.0, %v548
  %v550 = vpop.f32.mrb[0].mxu0
  %551 = vmatprep.mubr.f32.mxu0 %v51
  %552 = vmatmul.mubr.f32.gmra.mrb[0].mxu0 %v50
  %v553 = vpop.f32.mrb[0].mxu0
  %v554 = vadd.f32 0.0, %v553
  %v555 = vpop.f32.mrb[0].mxu0
  %556 = vmatprep.mubr.f32.mxu0 %v64
  %557 = vmatmul.mubr.f32.gmra.mrb[0].mxu0 %v63
  %v558 = vpop.f32.mrb[0].mxu0
  %v559 = vadd.f32 0.0, %v558
  %v560 = vpop.f32.mrb[0].mxu0
  %561 = vmatprep.mubr.f32.mxu0 %v77
  %562 = vmatmul.mubr.f32.gmra.mrb[0].mxu0 %v76
  %v563 = vpop.f32.mrb[0].mxu0
  %v564 = vadd.f32 0.0, %v563
  %v565 = vpop.f32.mrb[0].mxu0
  %566 = vmatprep.mubr.f32.mxu0 %v90
  %567 = vmatmul.mubr.f32.gmra.mrb[0].mxu0 %v89
  %v568 = vpop.f32.mrb[0].mxu0
  %v569 = vadd.f32 0.0, %v568
  %v570 = vpop.f32.mrb[0].mxu0
  %571 = vmatprep.mubr.f32.mxu0 %v103
  %572 = vmatmul.mubr.f32.gmra.mrb[0].mxu0 %v102
  %v573 = vpop.f32.mrb[0].mxu0
  %v574 = vadd.f32 0.0, %v573
  %v575 = vpop.f32.mrb[0].mxu0
  %576 = vmatprep.mubr.f32.mxu0 %v116
  %577 = vmatmul.mubr.f32.gmra.mrb[0].mxu0 %v115
  %v578 = vpop.f32.mrb[0].mxu0
  %v579 = vadd.f32 0.0, %v578
  %v580 = vpop.f32.mrb[0].mxu0
  %581 = vmatprep.mubr.f32.mxu0 %v129
  %582 = vmatmul.mubr.f32.gmra.mrb[0].mxu0 %v128
  %v583 = vpop.f32.mrb[0].mxu0
  %v584 = vadd.f32 0.0, %v583
  %v585 = vpop.f32.mrb[0].mxu0
  %586 = vmatprep.mubr.f32.mxu0 %v142
  %587 = vmatmul.mubr.f32.gmra.mrb[0].mxu0 %v141
  %v588 = vpop.f32.mrb[0].mxu0
  %v589 = vadd.f32 0.0, %v588
  %v590 = vpop.f32.mrb[0].mxu0
  %591 = vmatprep.mubr.f32.mxu0 %v155
  %592 = vmatmul.mubr.f32.gmra.mrb[0].mxu0 %v154
  %v593 = vpop.f32.mrb[0].mxu0
  %v594 = vadd.f32 0.0, %v593
  %v595 = vpop.f32.mrb[0].mxu0
  %596 = vmatprep.mubr.f32.mxu0 %v168
  %597 = vmatmul.mubr.f32.gmra.mrb[0].mxu0 %v167
  %v598 = vpop.f32.mrb[0].mxu0
  %v599 = vadd.f32 0.0, %v598
  %v600 = vpop.f32.mrb[0].mxu0
  %601 = vmatprep.mubr.f32.mxu0 %v181
  %602 = vmatmul.mubr.f32.gmra.mrb[0].mxu0 %v180
  %v603 = vpop.f32.mrb[0].mxu0
  %v604 = vadd.f32 0.0, %v603
  %v605 = vpop.f32.mrb[0].mxu0
  %606 = vmatprep.mubr.f32.mxu0 %v194
  %607 = vmatmul.mubr.f32.gmra.mrb[0].mxu0 %v193
  %v608 = vpop.f32.mrb[0].mxu0
  %v609 = vadd.f32 0.0, %v608
  %v610 = vpop.f32.mrb[0].mxu0
  %611 = vmatprep.mubr.f32.mxu0 %v207
  %612 = vmatmul.mubr.f32.gmra.mrb[0].mxu0 %v206
  %v613 = vpop.f32.mrb[0].mxu0
  %v614 = vadd.f32 0.0, %v613
  %v615 = vpop.f32.mrb[0].mxu0
  %616 = vdwg.mxu0
  %617 = vmatprep.subr.mxu0 0.0
  %618 = vmatpush1.msra.mxu0 %v251
  %619 = vmatprep.subr.mxu0 0.0
  %620 = vmatpush1.msra.mxu0 %v252
  %621 = vmatprep.subr.mxu0 0.0
  %622 = vmatpush1.msra.mxu0 %v253
  %623 = vmatprep.subr.mxu0 0.0
  %624 = vmatpush1.msra.mxu0 %v254
  %625 = vmatprep.subr.mxu0 0.0
  %626 = vmatpush1.msra.mxu0 %v255
  %627 = vmatprep.subr.mxu0 0.0
  %628 = vmatpush1.msra.mxu0 %v256
  %629 = vmatprep.subr.mxu0 0.0
  %630 = vmatpush1.msra.mxu0 %v257
  %631 = vmatprep.subr.mxu0 0.0
  %632 = vmatpush1.msra.mxu0 %v258
  %633 = vmatprep.subr.mxu0 0.0
  %634 = vmatpush1.msra.mxu0 %v259
  %635 = vmatprep.subr.mxu0 0.0
  %636 = vmatpush1.msra.mxu0 %v260
  %637 = vmatprep.subr.mxu0 0.0
  %638 = vmatpush1.msra.mxu0 %v261
  %639 = vmatprep.subr.mxu0 0.0
  %640 = vmatpush1.msra.mxu0 %v262
  %641 = vmatprep.subr.mxu0 0.0
  %642 = vmatpush1.msra.mxu0 %v263
  %643 = vmatprep.subr.mxu0 0.0
  %644 = vmatpush1.msra.mxu0 %v264
  %645 = vmatprep.subr.mxu0 0.0
  %646 = vmatpush1.msra.mxu0 %v265
  %647 = vmatprep.subr.mxu0 0.0
  %648 = vmatpush1.msra.mxu0 %v266
  %649 = vmatprep.subr.mxu0 0.0
  %650 = vmatpush1.msra.mxu0 %v267
  %651 = vmatprep.subr.mxu0 0.0
  %652 = vmatpush1.msra.mxu0 %v268
  %653 = vmatprep.subr.mxu0 0.0
  %654 = vmatpush1.msra.mxu0 %v269
  %655 = vmatprep.subr.mxu0 0.0
  %656 = vmatpush1.msra.mxu0 %v270
  %657 = vmatprep.subr.mxu0 0.0
  %658 = vmatpush1.msra.mxu0 %v271
  %659 = vmatprep.subr.mxu0 0.0
  %660 = vmatpush1.msra.mxu0 %v272
  %661 = vmatprep.subr.mxu0 0.0
  %662 = vmatpush1.msra.mxu0 %v273
  %663 = vmatprep.subr.mxu0 0.0
  %664 = vmatpush1.msra.mxu0 %v274
  %665 = vmatprep.subr.mxu0 0.0
  %666 = vmatpush1.msra.mxu0 %v275
  %667 = vmatprep.subr.mxu0 0.0
  %668 = vmatpush1.msra.mxu0 %v276
  %669 = vmatprep.subr.mxu0 0.0
  %670 = vmatpush1.msra.mxu0 %v277
  %671 = vmatprep.subr.mxu0 0.0
  %672 = vmatpush1.msra.mxu0 %v278
  %673 = vmatprep.subr.mxu0 0.0
  %674 = vmatpush1.msra.mxu0 %v279
  %675 = vmatprep.subr.mxu0 0.0
  %676 = vmatpush1.msra.mxu0 %v280
  %677 = vmatprep.subr.mxu0 0.0
  %678 = vmatpush1.msra.mxu0 %v281
  %679 = vmatprep.subr.mxu0 0.0
  %680 = vmatpush1.msra.mxu0 %v282
  %681 = vmatprep.mubr.f32.mxu0 %v14
  %682 = vmatmul.mubr.f32.gmra.mrb[0].mxu0 %v13
  %v683 = vpop.f32.mrb[0].mxu0
  %v684 = vadd.f32 %v539, %v683
  %v685 = vpop.f32.mrb[0].mxu0
  %686 = vmatprep.mubr.f32.mxu0 %v27
  %687 = vmatmul.mubr.f32.gmra.mrb[0].mxu0 %v26
  %v688 = vpop.f32.mrb[0].mxu0
  %v689 = vadd.f32 %v544, %v688
  %v690 = vpop.f32.mrb[0].mxu0
  %691 = vmatprep.mubr.f32.mxu0 %v40
  %692 = vmatmul.mubr.f32.gmra.mrb[0].mxu0 %v39
  %v693 = vpop.f32.mrb[0].mxu0
  %v694 = vadd.f32 %v549, %v693
  %v695 = vpop.f32.mrb[0].mxu0
  %696 = vmatprep.mubr.f32.mxu0 %v53
  %697 = vmatmul.mubr.f32.gmra.mrb[0].mxu0 %v52
  %v698 = vpop.f32.mrb[0].mxu0
  %v699 = vadd.f32 %v554, %v698
  %v700 = vpop.f32.mrb[0].mxu0
  %701 = vmatprep.mubr.f32.mxu0 %v66
  %702 = vmatmul.mubr.f32.gmra.mrb[0].mxu0 %v65
  %v703 = vpop.f32.mrb[0].mxu0
  %v704 = vadd.f32 %v559, %v703
  %v705 = vpop.f32.mrb[0].mxu0
  %706 = vmatprep.mubr.f32.mxu0 %v79
  %707 = vmatmul.mubr.f32.gmra.mrb[0].mxu0 %v78
  %v708 = vpop.f32.mrb[0].mxu0
  %v709 = vadd.f32 %v564, %v708
  %v710 = vpop.f32.mrb[0].mxu0
  %711 = vmatprep.mubr.f32.mxu0 %v92
  %712 = vmatmul.mubr.f32.gmra.mrb[0].mxu0 %v91
  %v713 = vpop.f32.mrb[0].mxu0
  %v714 = vadd.f32 %v569, %v713
  %v715 = vpop.f32.mrb[0].mxu0
  %716 = vmatprep.mubr.f32.mxu0 %v105
  %717 = vmatmul.mubr.f32.gmra.mrb[0].mxu0 %v104
  %v718 = vpop.f32.mrb[0].mxu0
  %v719 = vadd.f32 %v574, %v718
  %v720 = vpop.f32.mrb[0].mxu0
  %721 = vmatprep.mubr.f32.mxu0 %v118
  %722 = vmatmul.mubr.f32.gmra.mrb[0].mxu0 %v117
  %v723 = vpop.f32.mrb[0].mxu0
  %v724 = vadd.f32 %v579, %v723
  %v725 = vpop.f32.mrb[0].mxu0
  %726 = vmatprep.mubr.f32.mxu0 %v131
  %727 = vmatmul.mubr.f32.gmra.mrb[0].mxu0 %v130
  %v728 = vpop.f32.mrb[0].mxu0
  %v729 = vadd.f32 %v584, %v728
  %v730 = vpop.f32.mrb[0].mxu0
  %731 = vmatprep.mubr.f32.mxu0 %v144
  %732 = vmatmul.mubr.f32.gmra.mrb[0].mxu0 %v143
  %v733 = vpop.f32.mrb[0].mxu0
  %v734 = vadd.f32 %v589, %v733
  %v735 = vpop.f32.mrb[0].mxu0
  %736 = vmatprep.mubr.f32.mxu0 %v157
  %737 = vmatmul.mubr.f32.gmra.mrb[0].mxu0 %v156
  %v738 = vpop.f32.mrb[0].mxu0
  %v739 = vadd.f32 %v594, %v738
  %v740 = vpop.f32.mrb[0].mxu0
  %741 = vmatprep.mubr.f32.mxu0 %v170
  %742 = vmatmul.mubr.f32.gmra.mrb[0].mxu0 %v169
  %v743 = vpop.f32.mrb[0].mxu0
  %v744 = vadd.f32 %v599, %v743
  %v745 = vpop.f32.mrb[0].mxu0
  %746 = vmatprep.mubr.f32.mxu0 %v183
  %747 = vmatmul.mubr.f32.gmra.mrb[0].mxu0 %v182
  %v748 = vpop.f32.mrb[0].mxu0
  %v749 = vadd.f32 %v604, %v748
  %v750 = vpop.f32.mrb[0].mxu0
  %751 = vmatprep.mubr.f32.mxu0 %v196
  %752 = vmatmul.mubr.f32.gmra.mrb[0].mxu0 %v195
  %v753 = vpop.f32.mrb[0].mxu0
  %v754 = vadd.f32 %v609, %v753
  %v755 = vpop.f32.mrb[0].mxu0
  %756 = vmatprep.mubr.f32.mxu0 %v209
  %757 = vmatmul.mubr.f32.gmra.mrb[0].mxu0 %v208
  %v758 = vpop.f32.mrb[0].mxu0
  %v759 = vadd.f32 %v614, %v758
  %v760 = vpop.f32.mrb[0].mxu0
  %761 = vdwg.mxu0
  %762 = vmatprep.subr.mxu0 0.0
  %763 = vmatpush1.msra.mxu0 %v283
  %764 = vmatprep.subr.mxu0 0.0
  %765 = vmatpush1.msra.mxu0 %v284
  %766 = vmatprep.subr.mxu0 0.0
  %767 = vmatpush1.msra.mxu0 %v285
  %768 = vmatprep.subr.mxu0 0.0
  %769 = vmatpush1.msra.mxu0 %v286
  %770 = vmatprep.subr.mxu0 0.0
  %771 = vmatpush1.msra.mxu0 %v287
  %772 = vmatprep.subr.mxu0 0.0
  %773 = vmatpush1.msra.mxu0 %v288
  %774 = vmatprep.subr.mxu0 0.0
  %775 = vmatpush1.msra.mxu0 %v289
  %776 = vmatprep.subr.mxu0 0.0
  %777 = vmatpush1.msra.mxu0 %v290
  %778 = vmatprep.subr.mxu0 0.0
  %779 = vmatpush1.msra.mxu0 %v291
  %780 = vmatprep.subr.mxu0 0.0
  %781 = vmatpush1.msra.mxu0 %v292
  %782 = vmatprep.subr.mxu0 0.0
  %783 = vmatpush1.msra.mxu0 %v293
  %784 = vmatprep.subr.mxu0 0.0
  %785 = vmatpush1.msra.mxu0 %v294
  %786 = vmatprep.subr.mxu0 0.0
  %787 = vmatpush1.msra.mxu0 %v295
  %788 = vmatprep.subr.mxu0 0.0
  %789 = vmatpush1.msra.mxu0 %v296
  %790 = vmatprep.subr.mxu0 0.0
  %791 = vmatpush1.msra.mxu0 %v297
  %792 = vmatprep.subr.mxu0 0.0
  %793 = vmatpush1.msra.mxu0 %v298
  %794 = vmatprep.subr.mxu0 0.0
  %795 = vmatpush1.msra.mxu0 %v299
  %796 = vmatprep.subr.mxu0 0.0
  %797 = vmatpush1.msra.mxu0 %v300
  %798 = vmatprep.subr.mxu0 0.0
  %799 = vmatpush1.msra.mxu0 %v301
  %800 = vmatprep.subr.mxu0 0.0
  %801 = vmatpush1.msra.mxu0 %v302
  %802 = vmatprep.subr.mxu0 0.0
  %803 = vmatpush1.msra.mxu0 %v303
  %804 = vmatprep.subr.mxu0 0.0
  %805 = vmatpush1.msra.mxu0 %v304
  %806 = vmatprep.subr.mxu0 0.0
  %807 = vmatpush1.msra.mxu0 %v305
  %808 = vmatprep.subr.mxu0 0.0
  %809 = vmatpush1.msra.mxu0 %v306
  %810 = vmatprep.subr.mxu0 0.0
  %811 = vmatpush1.msra.mxu0 %v307
  %812 = vmatprep.subr.mxu0 0.0
  %813 = vmatpush1.msra.mxu0 %v308
  %814 = vmatprep.subr.mxu0 0.0
  %815 = vmatpush1.msra.mxu0 %v309
  %816 = vmatprep.subr.mxu0 0.0
  %817 = vmatpush1.msra.mxu0 %v310
  %818 = vmatprep.subr.mxu0 0.0
  %819 = vmatpush1.msra.mxu0 %v311
  %820 = vmatprep.subr.mxu0 0.0
  %821 = vmatpush1.msra.mxu0 %v312
  %822 = vmatprep.subr.mxu0 0.0
  %823 = vmatpush1.msra.mxu0 %v313
  %824 = vmatprep.subr.mxu0 0.0
  %825 = vmatpush1.msra.mxu0 %v314
  %826 = vmatprep.mubr.f32.mxu0 %v16
  %827 = vmatmul.mubr.f32.gmra.mrb[0].mxu0 %v15
  %v828 = vpop.f32.mrb[0].mxu0
  %v829 = vadd.f32 %v684, %v828
  %v830 = vpop.f32.mrb[0].mxu0
  %831 = vmatprep.mubr.f32.mxu0 %v29
  %832 = vmatmul.mubr.f32.gmra.mrb[0].mxu0 %v28
  %v833 = vpop.f32.mrb[0].mxu0
  %v834 = vadd.f32 %v689, %v833
  %v835 = vpop.f32.mrb[0].mxu0
  %836 = vmatprep.mubr.f32.mxu0 %v42
  %837 = vmatmul.mubr.f32.gmra.mrb[0].mxu0 %v41
  %v838 = vpop.f32.mrb[0].mxu0
  %v839 = vadd.f32 %v694, %v838
  %v840 = vpop.f32.mrb[0].mxu0
  %841 = vmatprep.mubr.f32.mxu0 %v55
  %842 = vmatmul.mubr.f32.gmra.mrb[0].mxu0 %v54
  %v843 = vpop.f32.mrb[0].mxu0
  %v844 = vadd.f32 %v699, %v843
  %v845 = vpop.f32.mrb[0].mxu0
  %846 = vmatprep.mubr.f32.mxu0 %v68
  %847 = vmatmul.mubr.f32.gmra.mrb[0].mxu0 %v67
  %v848 = vpop.f32.mrb[0].mxu0
  %v849 = vadd.f32 %v704, %v848
  %v850 = vpop.f32.mrb[0].mxu0
  %851 = vmatprep.mubr.f32.mxu0 %v81
  %852 = vmatmul.mubr.f32.gmra.mrb[0].mxu0 %v80
  %v853 = vpop.f32.mrb[0].mxu0
  %v854 = vadd.f32 %v709, %v853
  %v855 = vpop.f32.mrb[0].mxu0
  %856 = vmatprep.mubr.f32.mxu0 %v94
  %857 = vmatmul.mubr.f32.gmra.mrb[0].mxu0 %v93
  %v858 = vpop.f32.mrb[0].mxu0
  %v859 = vadd.f32 %v714, %v858
  %v860 = vpop.f32.mrb[0].mxu0
  %861 = vmatprep.mubr.f32.mxu0 %v107
  %862 = vmatmul.mubr.f32.gmra.mrb[0].mxu0 %v106
  %v863 = vpop.f32.mrb[0].mxu0
  %v864 = vadd.f32 %v719, %v863
  %v865 = vpop.f32.mrb[0].mxu0
  %866 = vmatprep.mubr.f32.mxu0 %v120
  %867 = vmatmul.mubr.f32.gmra.mrb[0].mxu0 %v119
  %v868 = vpop.f32.mrb[0].mxu0
  %v869 = vadd.f32 %v724, %v868
  %v870 = vpop.f32.mrb[0].mxu0
  %871 = vmatprep.mubr.f32.mxu0 %v133
  %872 = vmatmul.mubr.f32.gmra.mrb[0].mxu0 %v132
  %v873 = vpop.f32.mrb[0].mxu0
  %v874 = vadd.f32 %v729, %v873
  %v875 = vpop.f32.mrb[0].mxu0
  %876 = vmatprep.mubr.f32.mxu0 %v146
  %877 = vmatmul.mubr.f32.gmra.mrb[0].mxu0 %v145
  %v878 = vpop.f32.mrb[0].mxu0
  %v879 = vadd.f32 %v734, %v878
  %v880 = vpop.f32.mrb[0].mxu0
  %881 = vmatprep.mubr.f32.mxu0 %v159
  %882 = vmatmul.mubr.f32.gmra.mrb[0].mxu0 %v158
  %v883 = vpop.f32.mrb[0].mxu0
  %v884 = vadd.f32 %v739, %v883
  %v885 = vpop.f32.mrb[0].mxu0
  %886 = vmatprep.mubr.f32.mxu0 %v172
  %887 = vmatmul.mubr.f32.gmra.mrb[0].mxu0 %v171
  %v888 = vpop.f32.mrb[0].mxu0
  %v889 = vadd.f32 %v744, %v888
  %v890 = vpop.f32.mrb[0].mxu0
  %891 = vmatprep.mubr.f32.mxu0 %v185
  %892 = vmatmul.mubr.f32.gmra.mrb[0].mxu0 %v184
  %v893 = vpop.f32.mrb[0].mxu0
  %v894 = vadd.f32 %v749, %v893
  %v895 = vpop.f32.mrb[0].mxu0
  %896 = vmatprep.mubr.f32.mxu0 %v198
  %897 = vmatmul.mubr.f32.gmra.mrb[0].mxu0 %v197
  %v898 = vpop.f32.mrb[0].mxu0
  %v899 = vadd.f32 %v754, %v898
  %v900 = vpop.f32.mrb[0].mxu0
  %901 = vmatprep.mubr.f32.mxu0 %v211
  %902 = vmatmul.mubr.f32.gmra.mrb[0].mxu0 %v210
  %v903 = vpop.f32.mrb[0].mxu0
  %v904 = vadd.f32 %v759, %v903
  %v905 = vpop.f32.mrb[0].mxu0
  %906 = vdwg.mxu0
  %907 = vmatprep.subr.mxu0 0.0
  %908 = vmatpush1.msra.mxu0 %v315
  %909 = vmatprep.subr.mxu0 0.0
  %910 = vmatpush1.msra.mxu0 %v316
  %911 = vmatprep.subr.mxu0 0.0
  %912 = vmatpush1.msra.mxu0 %v317
  %913 = vmatprep.subr.mxu0 0.0
  %914 = vmatpush1.msra.mxu0 %v318
  %915 = vmatprep.subr.mxu0 0.0
  %916 = vmatpush1.msra.mxu0 %v319
  %917 = vmatprep.subr.mxu0 0.0
  %918 = vmatpush1.msra.mxu0 %v320
  %919 = vmatprep.subr.mxu0 0.0
  %920 = vmatpush1.msra.mxu0 %v321
  %921 = vmatprep.subr.mxu0 0.0
  %922 = vmatpush1.msra.mxu0 %v322
  %923 = vmatprep.subr.mxu0 0.0
  %924 = vmatpush1.msra.mxu0 %v323
  %925 = vmatprep.subr.mxu0 0.0
  %926 = vmatpush1.msra.mxu0 %v324
  %927 = vmatprep.subr.mxu0 0.0
  %928 = vmatpush1.msra.mxu0 %v325
  %929 = vmatprep.subr.mxu0 0.0
  %930 = vmatpush1.msra.mxu0 %v326
  %931 = vmatprep.subr.mxu0 0.0
  %932 = vmatpush1.msra.mxu0 %v327
  %933 = vmatprep.subr.mxu0 0.0
  %934 = vmatpush1.msra.mxu0 %v328
  %935 = vmatprep.subr.mxu0 0.0
  %936 = vmatpush1.msra.mxu0 %v329
  %937 = vmatprep.subr.mxu0 0.0
  %938 = vmatpush1.msra.mxu0 %v330
  %939 = vmatprep.subr.mxu0 0.0
  %940 = vmatpush1.msra.mxu0 %v331
  %941 = vmatprep.subr.mxu0 0.0
  %942 = vmatpush1.msra.mxu0 %v332
  %943 = vmatprep.subr.mxu0 0.0
  %944 = vmatpush1.msra.mxu0 %v333
  %945 = vmatprep.subr.mxu0 0.0
  %946 = vmatpush1.msra.mxu0 %v334
  %947 = vmatprep.subr.mxu0 0.0
  %948 = vmatpush1.msra.mxu0 %v335
  %949 = vmatprep.subr.mxu0 0.0
  %950 = vmatpush1.msra.mxu0 %v336
  %951 = vmatprep.subr.mxu0 0.0
  %952 = vmatpush1.msra.mxu0 %v337
  %953 = vmatprep.subr.mxu0 0.0
  %954 = vmatpush1.msra.mxu0 %v338
  %955 = vmatprep.subr.mxu0 0.0
  %956 = vmatpush1.msra.mxu0 %v339
  %957 = vmatprep.subr.mxu0 0.0
  %958 = vmatpush1.msra.mxu0 %v340
  %959 = vmatprep.subr.mxu0 0.0
  %960 = vmatpush1.msra.mxu0 %v341
  %961 = vmatprep.subr.mxu0 0.0
  %962 = vmatpush1.msra.mxu0 %v342
  %963 = vmatprep.subr.mxu0 0.0
  %964 = vmatpush1.msra.mxu0 %v343
  %965 = vmatprep.subr.mxu0 0.0
  %966 = vmatpush1.msra.mxu0 %v344
  %967 = vmatprep.subr.mxu0 0.0
  %968 = vmatpush1.msra.mxu0 %v345
  %969 = vmatprep.subr.mxu0 0.0
  %970 = vmatpush1.msra.mxu0 %v346
  %971 = vmatprep.mubr.f32.mxu0 %v18
  %972 = vmatmul.mubr.f32.gmra.mrb[0].mxu0 %v17
  %v973 = vpop.f32.mrb[0].mxu0
  %v974 = vadd.f32 %v829, %v973
  %v975 = vpop.f32.mrb[0].mxu0
  %976 = vmatprep.mubr.f32.mxu0 %v31
  %977 = vmatmul.mubr.f32.gmra.mrb[0].mxu0 %v30
  %v978 = vpop.f32.mrb[0].mxu0
  %v979 = vadd.f32 %v834, %v978
  %v980 = vpop.f32.mrb[0].mxu0
  %981 = vmatprep.mubr.f32.mxu0 %v44
  %982 = vmatmul.mubr.f32.gmra.mrb[0].mxu0 %v43
  %v983 = vpop.f32.mrb[0].mxu0
  %v984 = vadd.f32 %v839, %v983
  %v985 = vpop.f32.mrb[0].mxu0
  %986 = vmatprep.mubr.f32.mxu0 %v57
  %987 = vmatmul.mubr.f32.gmra.mrb[0].mxu0 %v56
  %v988 = vpop.f32.mrb[0].mxu0
  %v989 = vadd.f32 %v844, %v988
  %v990 = vpop.f32.mrb[0].mxu0
  %991 = vmatprep.mubr.f32.mxu0 %v70
  %992 = vmatmul.mubr.f32.gmra.mrb[0].mxu0 %v69
  %v993 = vpop.f32.mrb[0].mxu0
  %v994 = vadd.f32 %v849, %v993
  %v995 = vpop.f32.mrb[0].mxu0
  %996 = vmatprep.mubr.f32.mxu0 %v83
  %997 = vmatmul.mubr.f32.gmra.mrb[0].mxu0 %v82
  %v998 = vpop.f32.mrb[0].mxu0
  %v999 = vadd.f32 %v854, %v998
  %v1000 = vpop.f32.mrb[0].mxu0
  %1001 = vmatprep.mubr.f32.mxu0 %v96
  %1002 = vmatmul.mubr.f32.gmra.mrb[0].mxu0 %v95
  %v1003 = vpop.f32.mrb[0].mxu0
  %v1004 = vadd.f32 %v859, %v1003
  %v1005 = vpop.f32.mrb[0].mxu0
  %1006 = vmatprep.mubr.f32.mxu0 %v109
  %1007 = vmatmul.mubr.f32.gmra.mrb[0].mxu0 %v108
  %v1008 = vpop.f32.mrb[0].mxu0
  %v1009 = vadd.f32 %v864, %v1008
  %v1010 = vpop.f32.mrb[0].mxu0
  %1011 = vmatprep.mubr.f32.mxu0 %v122
  %1012 = vmatmul.mubr.f32.gmra.mrb[0].mxu0 %v121
  %v1013 = vpop.f32.mrb[0].mxu0
  %v1014 = vadd.f32 %v869, %v1013
  %v1015 = vpop.f32.mrb[0].mxu0
  %1016 = vmatprep.mubr.f32.mxu0 %v135
  %1017 = vmatmul.mubr.f32.gmra.mrb[0].mxu0 %v134
  %v1018 = vpop.f32.mrb[0].mxu0
  %v1019 = vadd.f32 %v874, %v1018
  %v1020 = vpop.f32.mrb[0].mxu0
  %1021 = vmatprep.mubr.f32.mxu0 %v148
  %1022 = vmatmul.mubr.f32.gmra.mrb[0].mxu0 %v147
  %v1023 = vpop.f32.mrb[0].mxu0
  %v1024 = vadd.f32 %v879, %v1023
  %v1025 = vpop.f32.mrb[0].mxu0
  %1026 = vmatprep.mubr.f32.mxu0 %v161
  %1027 = vmatmul.mubr.f32.gmra.mrb[0].mxu0 %v160
  %v1028 = vpop.f32.mrb[0].mxu0
  %v1029 = vadd.f32 %v884, %v1028
  %v1030 = vpop.f32.mrb[0].mxu0
  %1031 = vmatprep.mubr.f32.mxu0 %v174
  %1032 = vmatmul.mubr.f32.gmra.mrb[0].mxu0 %v173
  %v1033 = vpop.f32.mrb[0].mxu0
  %v1034 = vadd.f32 %v889, %v1033
  %v1035 = vpop.f32.mrb[0].mxu0
  %1036 = vmatprep.mubr.f32.mxu0 %v187
  %1037 = vmatmul.mubr.f32.gmra.mrb[0].mxu0 %v186
  %v1038 = vpop.f32.mrb[0].mxu0
  %v1039 = vadd.f32 %v894, %v1038
  %v1040 = vpop.f32.mrb[0].mxu0
  %1041 = vmatprep.mubr.f32.mxu0 %v200
  %1042 = vmatmul.mubr.f32.gmra.mrb[0].mxu0 %v199
  %v1043 = vpop.f32.mrb[0].mxu0
  %v1044 = vadd.f32 %v899, %v1043
  %v1045 = vpop.f32.mrb[0].mxu0
  %1046 = vmatprep.mubr.f32.mxu0 %v213
  %1047 = vmatmul.mubr.f32.gmra.mrb[0].mxu0 %v212
  %v1048 = vpop.f32.mrb[0].mxu0
  %v1049 = vadd.f32 %v904, %v1048
  %v1050 = vpop.f32.mrb[0].mxu0
  %1051 = vdwg.mxu0
  %1052 = vmatprep.subr.mxu0 0.0
  %1053 = vmatpush1.msra.mxu0 %v347
  %1054 = vmatprep.subr.mxu0 0.0
  %1055 = vmatpush1.msra.mxu0 %v348
  %1056 = vmatprep.subr.mxu0 0.0
  %1057 = vmatpush1.msra.mxu0 %v349
  %1058 = vmatprep.subr.mxu0 0.0
  %1059 = vmatpush1.msra.mxu0 %v350
  %1060 = vmatprep.subr.mxu0 0.0
  %1061 = vmatpush1.msra.mxu0 %v351
  %1062 = vmatprep.subr.mxu0 0.0
  %1063 = vmatpush1.msra.mxu0 %v352
  %1064 = vmatprep.subr.mxu0 0.0
  %1065 = vmatpush1.msra.mxu0 %v353
  %1066 = vmatprep.subr.mxu0 0.0
  %1067 = vmatpush1.msra.mxu0 %v354
  %1068 = vmatprep.subr.mxu0 0.0
  %1069 = vmatpush1.msra.mxu0 %v355
  %1070 = vmatprep.subr.mxu0 0.0
  %1071 = vmatpush1.msra.mxu0 %v356
  %1072 = vmatprep.subr.mxu0 0.0
  %1073 = vmatpush1.msra.mxu0 %v357
  %1074 = vmatprep.subr.mxu0 0.0
  %1075 = vmatpush1.msra.mxu0 %v358
  %1076 = vmatprep.subr.mxu0 0.0
  %1077 = vmatpush1.msra.mxu0 %v359
  %1078 = vmatprep.subr.mxu0 0.0
  %1079 = vmatpush1.msra.mxu0 %v360
  %1080 = vmatprep.subr.mxu0 0.0
  %1081 = vmatpush1.msra.mxu0 %v361
  %1082 = vmatprep.subr.mxu0 0.0
  %1083 = vmatpush1.msra.mxu0 %v362
  %1084 = vmatprep.subr.mxu0 0.0
  %1085 = vmatpush1.msra.mxu0 %v363
  %1086 = vmatprep.subr.mxu0 0.0
  %1087 = vmatpush1.msra.mxu0 %v364
  %1088 = vmatprep.subr.mxu0 0.0
  %1089 = vmatpush1.msra.mxu0 %v365
  %1090 = vmatprep.subr.mxu0 0.0
  %1091 = vmatpush1.msra.mxu0 %v366
  %1092 = vmatprep.subr.mxu0 0.0
  %1093 = vmatpush1.msra.mxu0 %v367
  %1094 = vmatprep.subr.mxu0 0.0
  %1095 = vmatpush1.msra.mxu0 %v368
  %1096 = vmatprep.subr.mxu0 0.0
  %1097 = vmatpush1.msra.mxu0 %v369
  %1098 = vmatprep.subr.mxu0 0.0
  %1099 = vmatpush1.msra.mxu0 %v370
  %1100 = vmatprep.subr.mxu0 0.0
  %1101 = vmatpush1.msra.mxu0 %v371
  %1102 = vmatprep.subr.mxu0 0.0
  %1103 = vmatpush1.msra.mxu0 %v372
  %1104 = vmatprep.subr.mxu0 0.0
  %1105 = vmatpush1.msra.mxu0 %v373
  %1106 = vmatprep.subr.mxu0 0.0
  %1107 = vmatpush1.msra.mxu0 %v374
  %1108 = vmatprep.subr.mxu0 0.0
  %1109 = vmatpush1.msra.mxu0 %v375
  %1110 = vmatprep.subr.mxu0 0.0
  %1111 = vmatpush1.msra.mxu0 %v376
  %1112 = vmatprep.subr.mxu0 0.0
  %1113 = vmatpush1.msra.mxu0 %v377
  %1114 = vmatprep.subr.mxu0 0.0
  %1115 = vmatpush1.msra.mxu0 %v378
  %1116 = vmatprep.mubr.f32.mxu0 %v20
  %1117 = vmatmul.mubr.f32.gmra.mrb[0].mxu0 %v19
  %v1118 = vpop.f32.mrb[0].mxu0
  %v1119 = vadd.f32 %v974, %v1118
  %v1120 = vpop.f32.mrb[0].mxu0
  %1121 = vmatprep.mubr.f32.mxu0 %v33
  %1122 = vmatmul.mubr.f32.gmra.mrb[0].mxu0 %v32
  %v1123 = vpop.f32.mrb[0].mxu0
  %v1124 = vadd.f32 %v979, %v1123
  %v1125 = vpop.f32.mrb[0].mxu0
  %1126 = vmatprep.mubr.f32.mxu0 %v46
  %1127 = vmatmul.mubr.f32.gmra.mrb[0].mxu0 %v45
  %v1128 = vpop.f32.mrb[0].mxu0
  %v1129 = vadd.f32 %v984, %v1128
  %v1130 = vpop.f32.mrb[0].mxu0
  %1131 = vmatprep.mubr.f32.mxu0 %v59
  %1132 = vmatmul.mubr.f32.gmra.mrb[0].mxu0 %v58
  %v1133 = vpop.f32.mrb[0].mxu0
  %v1134 = vadd.f32 %v989, %v1133
  %v1135 = vpop.f32.mrb[0].mxu0
  %1136 = vmatprep.mubr.f32.mxu0 %v72
  %1137 = vmatmul.mubr.f32.gmra.mrb[0].mxu0 %v71
  %v1138 = vpop.f32.mrb[0].mxu0
  %v1139 = vadd.f32 %v994, %v1138
  %v1140 = vpop.f32.mrb[0].mxu0
  %1141 = vmatprep.mubr.f32.mxu0 %v85
  %1142 = vmatmul.mubr.f32.gmra.mrb[0].mxu0 %v84
  %v1143 = vpop.f32.mrb[0].mxu0
  %v1144 = vadd.f32 %v999, %v1143
  %v1145 = vpop.f32.mrb[0].mxu0
  %1146 = vmatprep.mubr.f32.mxu0 %v98
  %1147 = vmatmul.mubr.f32.gmra.mrb[0].mxu0 %v97
  %v1148 = vpop.f32.mrb[0].mxu0
  %v1149 = vadd.f32 %v1004, %v1148
  %v1150 = vpop.f32.mrb[0].mxu0
  %1151 = vmatprep.mubr.f32.mxu0 %v111
  %1152 = vmatmul.mubr.f32.gmra.mrb[0].mxu0 %v110
  %v1153 = vpop.f32.mrb[0].mxu0
  %v1154 = vadd.f32 %v1009, %v1153
  %v1155 = vpop.f32.mrb[0].mxu0
  %1156 = vmatprep.mubr.f32.mxu0 %v124
  %1157 = vmatmul.mubr.f32.gmra.mrb[0].mxu0 %v123
  %v1158 = vpop.f32.mrb[0].mxu0
  %v1159 = vadd.f32 %v1014, %v1158
  %v1160 = vpop.f32.mrb[0].mxu0
  %1161 = vmatprep.mubr.f32.mxu0 %v137
  %1162 = vmatmul.mubr.f32.gmra.mrb[0].mxu0 %v136
  %v1163 = vpop.f32.mrb[0].mxu0
  %v1164 = vadd.f32 %v1019, %v1163
  %v1165 = vpop.f32.mrb[0].mxu0
  %1166 = vmatprep.mubr.f32.mxu0 %v150
  %1167 = vmatmul.mubr.f32.gmra.mrb[0].mxu0 %v149
  %v1168 = vpop.f32.mrb[0].mxu0
  %v1169 = vadd.f32 %v1024, %v1168
  %v1170 = vpop.f32.mrb[0].mxu0
  %1171 = vmatprep.mubr.f32.mxu0 %v163
  %1172 = vmatmul.mubr.f32.gmra.mrb[0].mxu0 %v162
  %v1173 = vpop.f32.mrb[0].mxu0
  %v1174 = vadd.f32 %v1029, %v1173
  %v1175 = vpop.f32.mrb[0].mxu0
  %1176 = vmatprep.mubr.f32.mxu0 %v176
  %1177 = vmatmul.mubr.f32.gmra.mrb[0].mxu0 %v175
  %v1178 = vpop.f32.mrb[0].mxu0
  %v1179 = vadd.f32 %v1034, %v1178
  %v1180 = vpop.f32.mrb[0].mxu0
  %1181 = vmatprep.mubr.f32.mxu0 %v189
  %1182 = vmatmul.mubr.f32.gmra.mrb[0].mxu0 %v188
  %v1183 = vpop.f32.mrb[0].mxu0
  %v1184 = vadd.f32 %v1039, %v1183
  %v1185 = vpop.f32.mrb[0].mxu0
  %1186 = vmatprep.mubr.f32.mxu0 %v202
  %1187 = vmatmul.mubr.f32.gmra.mrb[0].mxu0 %v201
  %v1188 = vpop.f32.mrb[0].mxu0
  %v1189 = vadd.f32 %v1044, %v1188
  %v1190 = vpop.f32.mrb[0].mxu0
  %1191 = vmatprep.mubr.f32.mxu0 %v215
  %1192 = vmatmul.mubr.f32.gmra.mrb[0].mxu0 %v214
  %v1193 = vpop.f32.mrb[0].mxu0
  %v1194 = vadd.f32 %v1049, %v1193
  %v1195 = vpop.f32.mrb[0].mxu0
  %1196 = vdwg.mxu0
  %1197 = vmatprep.subr.mxu0 0.0
  %1198 = vmatpush1.msra.mxu0 %v379
  %1199 = vmatprep.subr.mxu0 0.0
  %1200 = vmatpush1.msra.mxu0 %v380
  %1201 = vmatprep.subr.mxu0 0.0
  %1202 = vmatpush1.msra.mxu0 %v381
  %1203 = vmatprep.subr.mxu0 0.0
  %1204 = vmatpush1.msra.mxu0 %v382
  %1205 = vmatprep.subr.mxu0 0.0
  %1206 = vmatpush1.msra.mxu0 %v383
  %1207 = vmatprep.subr.mxu0 0.0
  %1208 = vmatpush1.msra.mxu0 %v384
  %1209 = vmatprep.subr.mxu0 0.0
  %1210 = vmatpush1.msra.mxu0 %v385
  %1211 = vmatprep.subr.mxu0 0.0
  %1212 = vmatpush1.msra.mxu0 %v386
  %1213 = vmatprep.subr.mxu0 0.0
  %1214 = vmatpush1.msra.mxu0 %v387
  %1215 = vmatprep.subr.mxu0 0.0
  %1216 = vmatpush1.msra.mxu0 %v388
  %1217 = vmatprep.subr.mxu0 0.0
  %1218 = vmatpush1.msra.mxu0 %v389
  %1219 = vmatprep.subr.mxu0 0.0
  %1220 = vmatpush1.msra.mxu0 %v390
  %1221 = vmatprep.subr.mxu0 0.0
  %1222 = vmatpush1.msra.mxu0 %v391
  %1223 = vmatprep.subr.mxu0 0.0
  %1224 = vmatpush1.msra.mxu0 %v392
  %1225 = vmatprep.subr.mxu0 0.0
  %1226 = vmatpush1.msra.mxu0 %v393
  %1227 = vmatprep.subr.mxu0 0.0
  %1228 = vmatpush1.msra.mxu0 %v394
  %1229 = vmatprep.subr.mxu0 0.0
  %1230 = vmatpush1.msra.mxu0 %v395
  %1231 = vmatprep.subr.mxu0 0.0
  %1232 = vmatpush1.msra.mxu0 %v396
  %1233 = vmatprep.subr.mxu0 0.0
  %1234 = vmatpush1.msra.mxu0 %v397
  %1235 = vmatprep.subr.mxu0 0.0
  %1236 = vmatpush1.msra.mxu0 %v398
  %1237 = vmatprep.subr.mxu0 0.0
  %1238 = vmatpush1.msra.mxu0 %v399
  %1239 = vmatprep.subr.mxu0 0.0
  %1240 = vmatpush1.msra.mxu0 %v400
  %1241 = vmatprep.subr.mxu0 0.0
  %1242 = vmatpush1.msra.mxu0 %v401
  %1243 = vmatprep.subr.mxu0 0.0
  %1244 = vmatpush1.msra.mxu0 %v402
  %1245 = vmatprep.subr.mxu0 0.0
  %1246 = vmatpush1.msra.mxu0 %v403
  %1247 = vmatprep.subr.mxu0 0.0
  %1248 = vmatpush1.msra.mxu0 %v404
  %1249 = vmatprep.subr.mxu0 0.0
  %1250 = vmatpush1.msra.mxu0 %v405
  %1251 = vmatprep.subr.mxu0 0.0
  %1252 = vmatpush1.msra.mxu0 %v406
  %1253 = vmatprep.subr.mxu0 0.0
  %1254 = vmatpush1.msra.mxu0 %v407
  %1255 = vmatprep.subr.mxu0 0.0
  %1256 = vmatpush1.msra.mxu0 %v408
  %1257 = vmatprep.subr.mxu0 0.0
  %1258 = vmatpush1.msra.mxu0 %v409
  %1259 = vmatprep.subr.mxu0 0.0
  %1260 = vmatpush1.msra.mxu0 %v410
  %1261 = vmatprep.mubr.f32.mxu0 %v22
  %1262 = vmatmul.mubr.f32.gmra.mrb[0].mxu0 %v21
  %v1263 = vpop.f32.mrb[0].mxu0
  %v1264 = vadd.f32 %v1119, %v1263
  %v1265 = vpop.f32.mrb[0].mxu0
  %1266 = vmatprep.mubr.f32.mxu0 %v35
  %1267 = vmatmul.mubr.f32.gmra.mrb[0].mxu0 %v34
  %v1268 = vpop.f32.mrb[0].mxu0
  %v1269 = vadd.f32 %v1124, %v1268
  %v1270 = vpop.f32.mrb[0].mxu0
  %1271 = vmatprep.mubr.f32.mxu0 %v48
  %1272 = vmatmul.mubr.f32.gmra.mrb[0].mxu0 %v47
  %v1273 = vpop.f32.mrb[0].mxu0
  %v1274 = vadd.f32 %v1129, %v1273
  %v1275 = vpop.f32.mrb[0].mxu0
  %1276 = vmatprep.mubr.f32.mxu0 %v61
  %1277 = vmatmul.mubr.f32.gmra.mrb[0].mxu0 %v60
  %v1278 = vpop.f32.mrb[0].mxu0
  %v1279 = vadd.f32 %v1134, %v1278
  %v1280 = vpop.f32.mrb[0].mxu0
  %1281 = vmatprep.mubr.f32.mxu0 %v74
  %1282 = vmatmul.mubr.f32.gmra.mrb[0].mxu0 %v73
  %v1283 = vpop.f32.mrb[0].mxu0
  %v1284 = vadd.f32 %v1139, %v1283
  %v1285 = vpop.f32.mrb[0].mxu0
  %1286 = vmatprep.mubr.f32.mxu0 %v87
  %1287 = vmatmul.mubr.f32.gmra.mrb[0].mxu0 %v86
  %v1288 = vpop.f32.mrb[0].mxu0
  %v1289 = vadd.f32 %v1144, %v1288
  %v1290 = vpop.f32.mrb[0].mxu0
  %1291 = vmatprep.mubr.f32.mxu0 %v100
  %1292 = vmatmul.mubr.f32.gmra.mrb[0].mxu0 %v99
  %v1293 = vpop.f32.mrb[0].mxu0
  %v1294 = vadd.f32 %v1149, %v1293
  %v1295 = vpop.f32.mrb[0].mxu0
  %1296 = vmatprep.mubr.f32.mxu0 %v113
  %1297 = vmatmul.mubr.f32.gmra.mrb[0].mxu0 %v112
  %v1298 = vpop.f32.mrb[0].mxu0
  %v1299 = vadd.f32 %v1154, %v1298
  %v1300 = vpop.f32.mrb[0].mxu0
  %1301 = vmatprep.mubr.f32.mxu0 %v126
  %1302 = vmatmul.mubr.f32.gmra.mrb[0].mxu0 %v125
  %v1303 = vpop.f32.mrb[0].mxu0
  %v1304 = vadd.f32 %v1159, %v1303
  %v1305 = vpop.f32.mrb[0].mxu0
  %1306 = vmatprep.mubr.f32.mxu0 %v139
  %1307 = vmatmul.mubr.f32.gmra.mrb[0].mxu0 %v138
  %v1308 = vpop.f32.mrb[0].mxu0
  %v1309 = vadd.f32 %v1164, %v1308
  %v1310 = vpop.f32.mrb[0].mxu0
  %1311 = vmatprep.mubr.f32.mxu0 %v152
  %1312 = vmatmul.mubr.f32.gmra.mrb[0].mxu0 %v151
  %v1313 = vpop.f32.mrb[0].mxu0
  %v1314 = vadd.f32 %v1169, %v1313
  %v1315 = vpop.f32.mrb[0].mxu0
  %1316 = vmatprep.mubr.f32.mxu0 %v165
  %1317 = vmatmul.mubr.f32.gmra.mrb[0].mxu0 %v164
  %v1318 = vpop.f32.mrb[0].mxu0
  %v1319 = vadd.f32 %v1174, %v1318
  %v1320 = vpop.f32.mrb[0].mxu0
  %1321 = vmatprep.mubr.f32.mxu0 %v178
  %1322 = vmatmul.mubr.f32.gmra.mrb[0].mxu0 %v177
  %v1323 = vpop.f32.mrb[0].mxu0
  %v1324 = vadd.f32 %v1179, %v1323
  %v1325 = vpop.f32.mrb[0].mxu0
  %1326 = vmatprep.mubr.f32.mxu0 %v191
  %1327 = vmatmul.mubr.f32.gmra.mrb[0].mxu0 %v190
  %v1328 = vpop.f32.mrb[0].mxu0
  %v1329 = vadd.f32 %v1184, %v1328
  %v1330 = vpop.f32.mrb[0].mxu0
  %1331 = vmatprep.mubr.f32.mxu0 %v204
  %1332 = vmatmul.mubr.f32.gmra.mrb[0].mxu0 %v203
  %v1333 = vpop.f32.mrb[0].mxu0
  %v1334 = vadd.f32 %v1189, %v1333
  %v1335 = vpop.f32.mrb[0].mxu0
  %1336 = vmatprep.mubr.f32.mxu0 %v217
  %1337 = vmatmul.mubr.f32.gmra.mrb[0].mxu0 %v216
  %v1338 = vpop.f32.mrb[0].mxu0
  %v1339 = vadd.f32 %v1194, %v1338
  %v1340 = vpop.f32.mrb[0].mxu0
  %1341 = vdwg.mxu0
  %1342 = vmatprep.subr.mxu0 0.0
  %1343 = vmatpush1.msra.mxu0 %v411
  %1344 = vmatprep.subr.mxu0 0.0
  %1345 = vmatpush1.msra.mxu0 %v412
  %1346 = vmatprep.subr.mxu0 0.0
  %1347 = vmatpush1.msra.mxu0 %v413
  %1348 = vmatprep.subr.mxu0 0.0
  %1349 = vmatpush1.msra.mxu0 %v414
  %1350 = vmatprep.subr.mxu0 0.0
  %1351 = vmatpush1.msra.mxu0 %v415
  %1352 = vmatprep.subr.mxu0 0.0
  %1353 = vmatpush1.msra.mxu0 %v416
  %1354 = vmatprep.subr.mxu0 0.0
  %1355 = vmatpush1.msra.mxu0 %v417
  %1356 = vmatprep.subr.mxu0 0.0
  %1357 = vmatpush1.msra.mxu0 %v418
  %1358 = vmatprep.subr.mxu0 0.0
  %1359 = vmatpush1.msra.mxu0 %v419
  %1360 = vmatprep.subr.mxu0 0.0
  %1361 = vmatpush1.msra.mxu0 %v420
  %1362 = vmatprep.subr.mxu0 0.0
  %1363 = vmatpush1.msra.mxu0 %v421
  %1364 = vmatprep.subr.mxu0 0.0
  %1365 = vmatpush1.msra.mxu0 %v422
  %1366 = vmatprep.subr.mxu0 0.0
  %1367 = vmatpush1.msra.mxu0 0.0
  %1368 = vmatprep.subr.mxu0 0.0
  %1369 = vmatpush1.msra.mxu0 0.0
  %1370 = vmatprep.subr.mxu0 0.0
  %1371 = vmatpush1.msra.mxu0 0.0
  %1372 = vmatprep.subr.mxu0 0.0
  %1373 = vmatpush1.msra.mxu0 0.0
  %1374 = vmatprep.subr.mxu0 0.0
  %1375 = vmatpush1.msra.mxu0 0.0
  %1376 = vmatprep.subr.mxu0 0.0
  %1377 = vmatpush1.msra.mxu0 0.0
  %1378 = vmatprep.subr.mxu0 0.0
  %1379 = vmatpush1.msra.mxu0 0.0
  %1380 = vmatprep.subr.mxu0 0.0
  %1381 = vmatpush1.msra.mxu0 0.0
  %1382 = vmatprep.subr.mxu0 0.0
  %1383 = vmatpush1.msra.mxu0 0.0
  %1384 = vmatprep.subr.mxu0 0.0
  %1385 = vmatpush1.msra.mxu0 0.0
  %1386 = vmatprep.subr.mxu0 0.0
  %1387 = vmatpush1.msra.mxu0 0.0
  %1388 = vmatprep.subr.mxu0 0.0
  %1389 = vmatpush1.msra.mxu0 0.0
  %1390 = vmatprep.subr.mxu0 0.0
  %1391 = vmatpush1.msra.mxu0 0.0
  %1392 = vmatprep.subr.mxu0 0.0
  %1393 = vmatpush1.msra.mxu0 0.0
  %1394 = vmatprep.subr.mxu0 0.0
  %1395 = vmatpush1.msra.mxu0 0.0
  %1396 = vmatprep.subr.mxu0 0.0
  %1397 = vmatpush1.msra.mxu0 0.0
  %1398 = vmatprep.subr.mxu0 0.0
  %1399 = vmatpush1.msra.mxu0 0.0
  %1400 = vmatprep.subr.mxu0 0.0
  %1401 = vmatpush1.msra.mxu0 0.0
  %1402 = vmatprep.subr.mxu0 0.0
  %1403 = vmatpush1.msra.mxu0 0.0
  %1404 = vmatprep.subr.mxu0 0.0
  %1405 = vmatpush1.msra.mxu0 0.0
  %1406 = vmatprep.mubr.f32.mxu0 0.0
  %1407 = vmatmul.mubr.f32.gmra.mrb[0].mxu0 %v425
  %v1408 = vpop.f32.mrb[0].mxu0
  %v1409 = vadd.f32 %v1264, %v1408
  %v1410 = vpop.f32.mrb[0].mxu0
  %1411 = vmatprep.mubr.f32.mxu0 0.0
  %1412 = vmatmul.mubr.f32.gmra.mrb[0].mxu0 %v428
  %v1413 = vpop.f32.mrb[0].mxu0
  %v1414 = vadd.f32 %v1269, %v1413
  %v1415 = vpop.f32.mrb[0].mxu0
  %1416 = vmatprep.mubr.f32.mxu0 0.0
  %1417 = vmatmul.mubr.f32.gmra.mrb[0].mxu0 %v431
  %v1418 = vpop.f32.mrb[0].mxu0
  %v1419 = vadd.f32 %v1274, %v1418
  %v1420 = vpop.f32.mrb[0].mxu0
  %1421 = vmatprep.mubr.f32.mxu0 0.0
  %1422 = vmatmul.mubr.f32.gmra.mrb[0].mxu0 %v434
  %v1423 = vpop.f32.mrb[0].mxu0
  %v1424 = vadd.f32 %v1279, %v1423
  %v1425 = vpop.f32.mrb[0].mxu0
  %1426 = vmatprep.mubr.f32.mxu0 0.0
  %1427 = vmatmul.mubr.f32.gmra.mrb[0].mxu0 %v437
  %v1428 = vpop.f32.mrb[0].mxu0
  %v1429 = vadd.f32 %v1284, %v1428
  %v1430 = vpop.f32.mrb[0].mxu0
  %1431 = vmatprep.mubr.f32.mxu0 0.0
  %1432 = vmatmul.mubr.f32.gmra.mrb[0].mxu0 %v440
  %v1433 = vpop.f32.mrb[0].mxu0
  %v1434 = vadd.f32 %v1289, %v1433
  %v1435 = vpop.f32.mrb[0].mxu0
  %1436 = vmatprep.mubr.f32.mxu0 0.0
  %1437 = vmatmul.mubr.f32.gmra.mrb[0].mxu0 %v443
  %v1438 = vpop.f32.mrb[0].mxu0
  %v1439 = vadd.f32 %v1294, %v1438
  %v1440 = vpop.f32.mrb[0].mxu0
  %1441 = vmatprep.mubr.f32.mxu0 0.0
  %1442 = vmatmul.mubr.f32.gmra.mrb[0].mxu0 %v446
  %v1443 = vpop.f32.mrb[0].mxu0
  %v1444 = vadd.f32 %v1299, %v1443
  %v1445 = vpop.f32.mrb[0].mxu0
  %1446 = vmatprep.mubr.f32.mxu0 0.0
  %1447 = vmatmul.mubr.f32.gmra.mrb[0].mxu0 %v449
  %v1448 = vpop.f32.mrb[0].mxu0
  %v1449 = vadd.f32 %v1304, %v1448
  %v1450 = vpop.f32.mrb[0].mxu0
  %1451 = vmatprep.mubr.f32.mxu0 0.0
  %1452 = vmatmul.mubr.f32.gmra.mrb[0].mxu0 %v452
  %v1453 = vpop.f32.mrb[0].mxu0
  %v1454 = vadd.f32 %v1309, %v1453
  %v1455 = vpop.f32.mrb[0].mxu0
  %1456 = vmatprep.mubr.f32.mxu0 0.0
  %1457 = vmatmul.mubr.f32.gmra.mrb[0].mxu0 %v455
  %v1458 = vpop.f32.mrb[0].mxu0
  %v1459 = vadd.f32 %v1314, %v1458
  %v1460 = vpop.f32.mrb[0].mxu0
  %1461 = vmatprep.mubr.f32.mxu0 0.0
  %1462 = vmatmul.mubr.f32.gmra.mrb[0].mxu0 %v458
  %v1463 = vpop.f32.mrb[0].mxu0
  %v1464 = vadd.f32 %v1319, %v1463
  %v1465 = vpop.f32.mrb[0].mxu0
  %1466 = vmatprep.mubr.f32.mxu0 0.0
  %1467 = vmatmul.mubr.f32.gmra.mrb[0].mxu0 %v461
  %v1468 = vpop.f32.mrb[0].mxu0
  %v1469 = vadd.f32 %v1324, %v1468
  %v1470 = vpop.f32.mrb[0].mxu0
  %1471 = vmatprep.mubr.f32.mxu0 0.0
  %1472 = vmatmul.mubr.f32.gmra.mrb[0].mxu0 %v464
  %v1473 = vpop.f32.mrb[0].mxu0
  %v1474 = vadd.f32 %v1329, %v1473
  %v1475 = vpop.f32.mrb[0].mxu0
  %1476 = vmatprep.mubr.f32.mxu0 0.0
  %1477 = vmatmul.mubr.f32.gmra.mrb[0].mxu0 %v467
  %v1478 = vpop.f32.mrb[0].mxu0
  %v1479 = vadd.f32 %v1334, %v1478
  %v1480 = vpop.f32.mrb[0].mxu0
  %1481 = vmatprep.mubr.f32.mxu0 0.0
  %1482 = vmatmul.mubr.f32.gmra.mrb[0].mxu0 %v470
  %v1483 = vpop.f32.mrb[0].mxu0
  %v1484 = vadd.f32 %v1339, %v1483
  %v1485 = vpop.f32.mrb[0].mxu0
  %1486 = vdwg.mxu0
  %vm1487 = vcmask 400384
  %1488 = vst.msk [vmem:[%s2] sm:$0xff] %vm1487, %v1409
  %1489 = vst.msk [vmem:[%s2 + $0x8] sm:$0xff] %vm1487, %v1414
  %1490 = vst.msk [vmem:[%s2 + $0x10] sm:$0xff] %vm1487, %v1419
  %1491 = vst.msk [vmem:[%s2 + $0x18] sm:$0xff] %vm1487, %v1424
  %1492 = vst.msk [vmem:[%s2 + $0x20] sm:$0xff] %vm1487, %v1429
  %1493 = vst.msk [vmem:[%s2 + $0x28] sm:$0xff] %vm1487, %v1434
  %1494 = vst.msk [vmem:[%s2 + $0x30] sm:$0xff] %vm1487, %v1439
  %1495 = vst.msk [vmem:[%s2 + $0x38] sm:$0xff] %vm1487, %v1444
  %1496 = vst.msk [vmem:[%s2 + $0x40] sm:$0xff] %vm1487, %v1449
  %1497 = vst.msk [vmem:[%s2 + $0x48] sm:$0xff] %vm1487, %v1454
  %1498 = vst.msk [vmem:[%s2 + $0x50] sm:$0xff] %vm1487, %v1459
  %1499 = vst.msk [vmem:[%s2 + $0x58] sm:$0xff] %vm1487, %v1464
  %1500 = vst.msk [vmem:[%s2 + $0x60] sm:$0xff] %vm1487, %v1469
  %1501 = vst.msk [vmem:[%s2 + $0x68] sm:$0xff] %vm1487, %v1474
  %1502 = vst.msk [vmem:[%s2 + $0x70] sm:$0xff] %vm1487, %v1479
  %1503 = vst.msk [vmem:[%s2 + $0x78] sm:$0xff] %vm1487, %v1484
  // Predicated region
  $region10: #{tpu_custom_call.1} parent=0 // pred_check
    _
  $region11: #{tpu_custom_call.1} parent=0 // pred_check_branch
    %1505 = sbr.rel (0) target = $region13
  $region12: #{tpu_custom_call.1} parent=0 // pred_region
    _
  $region13: #{tpu_custom_call.1} parent=0 // pred_fallthru
    _
  // Predicated region
  $region14: #{tpu_custom_call.1} parent=0 // pred_check
    _
  $region15: #{tpu_custom_call.1} parent=0 // pred_check_branch
    %1507 = sbr.rel (0) target = $region17
  $region16: #{tpu_custom_call.1} parent=0 // pred_region
    _
  $region17: #{tpu_custom_call.1} parent=0 // pred_fallthru
    _

</llo_original>
